<compile_context>
chip_gen: v6e
topology: v6e:2x2x1
jax: 0.10.0
libtpu: 0.0.40
codegen_flags: <defaults>
</compile_context>

<pallas_src>
import jax
import jax.numpy as jnp
from jax.experimental import pallas as pl
from jax.experimental.pallas import tpu as pltpu


# ----------------------------------------------------------------------------
# Fused LAS kernel, one batch-block per grid step:
#   enc    = tanh(x @ W_enc + b_enc)              (Bb, T_enc, H)
#   q      = dec @ W_q                            (Bb, T_dec, H)
#   scores = einsum('btd,bsd->bts', q, enc)       (Bb, T_dec, T_enc)
#   attn   = softmax(scores, axis=-1)
#   ctx    = einsum('bts,bsh->bth', attn, enc)    (Bb, T_dec, H)
#   logits = q @ W_o[:H] + ctx @ W_o[H:] + b_o    (Bb, T_dec, V)
# ----------------------------------------------------------------------------
def _las_fused_kernel(x_ref, dec_ref, w_enc_ref, b_enc_ref, w_q_ref,
                      w_oq_ref, w_oc_ref, b_o_ref, o_ref):
    Bb, Te, Din = x_ref.shape
    _, Td, E = dec_ref.shape
    H = w_enc_ref.shape[1]
    V = w_oq_ref.shape[1]

    x = x_ref[...]                                   # (Bb, Te, Din)  bf16
    dec = dec_ref[...]                               # (Bb, Td, E)    bf16

    # --- Encoder: flatten (batch, time) so the MXU sees a tall M dimension. ---
    x2 = x.reshape(Bb * Te, Din)
    h = jnp.dot(x2, w_enc_ref[...], preferred_element_type=jnp.float32)
    h = h + b_enc_ref[...]                           # (1, H) broadcast, once/step
    enc_f32 = jnp.tanh(h)                            # f32 elementwise (v5e-safe)
    enc = enc_f32.astype(jnp.bfloat16).reshape(Bb, Te, H)

    # --- Query projection (flattened). ---
    d2 = dec.reshape(Bb * Td, E)
    q_f32 = jnp.dot(d2, w_q_ref[...], preferred_element_type=jnp.float32)
    q = q_f32.astype(jnp.bfloat16).reshape(Bb, Td, H)

    # --- Attention: contract feature dims directly (no explicit transpose). ---
    scores = jnp.einsum('btd,bsd->bts', q, enc,
                        preferred_element_type=jnp.float32)   # (Bb, Td, Te) f32

    m = jnp.max(scores, axis=-1, keepdims=True)
    e = jnp.exp(scores - m)
    denom = jnp.sum(e, axis=-1, keepdims=True)
    attn = e * pl.reciprocal(denom, approx=True)              # f32, EUP recip

    ctx = jnp.einsum('bts,bsh->bth', attn.astype(jnp.bfloat16), enc,
                     preferred_element_type=jnp.float32)      # (Bb, Td, H) f32

    # --- Output projection: two matmuls into one f32 accumulator (no concat). ---
    q2 = q.reshape(Bb * Td, H)
    c2 = ctx.astype(jnp.bfloat16).reshape(Bb * Td, H)
    logits = (jnp.dot(q2, w_oq_ref[...], preferred_element_type=jnp.float32)
              + jnp.dot(c2, w_oc_ref[...], preferred_element_type=jnp.float32)
              + b_o_ref[...])                                 # (Bb*Td, V) f32

    o_ref[...] = logits.reshape(Bb, Td, V).astype(o_ref.dtype)


def las_forward(encoder_inputs, decoder_inputs, params, teacher_forcing_rate,
                *, b_blk=None):
    # teacher_forcing_rate kept for API parity; unused (see TODO above).
    del teacher_forcing_rate
    B, T_enc, D_in = encoder_inputs.shape
    Bd, T_dec, E = decoder_inputs.shape
    assert B == Bd
    H = params["w_enc"].shape[1]
    V = params["w_o"].shape[1]

    if b_blk is None:
        b_blk = 2 if (B % 2 == 0 and B >= 4) else 1   # >=2 grid steps -> megacore
    assert B % b_blk == 0
    grid = (B // b_blk,)

    # Cast activations / weights to bf16 once (MXU-native); biases stay f32 since
    # they are added to f32 accumulators.
    x_bf = encoder_inputs.astype(jnp.bfloat16)
    dec_bf = decoder_inputs.astype(jnp.bfloat16)
    w_enc = params["w_enc"].astype(jnp.bfloat16)
    w_q = params["w_q"].astype(jnp.bfloat16)
    w_oq = params["w_o"][:H].astype(jnp.bfloat16)     # q-half of the projection
    w_oc = params["w_o"][H:].astype(jnp.bfloat16)     # ctx-half of the projection
    b_enc = params["b_enc"].astype(jnp.float32)
    b_o = params["b_o"].astype(jnp.float32)

    return pl.pallas_call(
        _las_fused_kernel,
        out_shape=jax.ShapeDtypeStruct((B, T_dec, V), jnp.float32),
        grid=grid,
        in_specs=[
            pl.BlockSpec((b_blk, T_enc, D_in), lambda b: (b, 0, 0)),
            pl.BlockSpec((b_blk, T_dec, E), lambda b: (b, 0, 0)),
            pl.BlockSpec((D_in, H), lambda b: (0, 0)),
            pl.BlockSpec((1, H), lambda b: (0, 0)),
            pl.BlockSpec((E, H), lambda b: (0, 0)),
            pl.BlockSpec((H, V), lambda b: (0, 0)),
            pl.BlockSpec((H, V), lambda b: (0, 0)),
            pl.BlockSpec((1, V), lambda b: (0, 0)),
        ],
        out_specs=pl.BlockSpec((b_blk, T_dec, V), lambda b: (b, 0, 0)),
        compiler_params=pltpu.CompilerParams(
            dimension_semantics=("parallel",)),
    )(x_bf, dec_bf, w_enc, b_enc, w_q, w_oq, w_oc, b_o)


# ----------------------------------------------------------------------------
# LAS wrapper (mirrors the PyTorch module's forward glue).
# ----------------------------------------------------------------------------
class LASPallas:
    def __init__(self, params):
        self.params = params
        self.teacher_forcing = 0.5

    def __call__(self, encoder_inputs, decoder_inputs, teacher_forcing_rate):
        # Matches reference: the passed rate is overridden by self.teacher_forcing.
        teacher_forcing_rate = self.teacher_forcing
        return las_forward(encoder_inputs, decoder_inputs, self.params,
                           teacher_forcing_rate)


def init_params(key, d_in, hidden, d_emb, vocab):
    k1, k2, k3, k4, k5 = jax.random.split(key, 5)
    scale = 0.1
    return {
        "w_enc": scale * jax.random.normal(k1, (d_in, hidden), jnp.float32),
        "b_enc": scale * jax.random.normal(k2, (1, hidden), jnp.float32),
        "w_q":   scale * jax.random.normal(k3, (d_emb, hidden), jnp.float32),
        "w_o":   scale * jax.random.normal(k4, (2 * hidden, vocab), jnp.float32),
        "b_o":   scale * jax.random.normal(k5, (1, vocab), jnp.float32),
    }


def _reference(encoder_inputs, decoder_inputs, params):
    # Pure-JAX reference with the same bf16 casts (f32 accumulation).
    H = params["w_enc"].shape[1]
    x = encoder_inputs.astype(jnp.bfloat16)
    dec = decoder_inputs.astype(jnp.bfloat16)
    w_enc = params["w_enc"].astype(jnp.bfloat16)
    w_q = params["w_q"].astype(jnp.bfloat16)
    w_oq = params["w_o"][:H].astype(jnp.bfloat16)
    w_oc = params["w_o"][H:].astype(jnp.bfloat16)

    enc = jnp.tanh(jnp.einsum('btd,dh->bth', x, w_enc,
                              preferred_element_type=jnp.float32)
                   + params["b_enc"])
    enc_b = enc.astype(jnp.bfloat16)
    q = jnp.einsum('bte,eh->bth', dec, w_q,
                   preferred_element_type=jnp.float32).astype(jnp.bfloat16)
    scores = jnp.einsum('btd,bsd->bts', q, enc_b,
                        preferred_element_type=jnp.float32)
    attn = jax.nn.softmax(scores, axis=-1)
    ctx = jnp.einsum('bts,bsh->bth', attn.astype(jnp.bfloat16), enc_b,
                     preferred_element_type=jnp.float32)
    logits = (jnp.einsum('bth,hv->btv', q, w_oq,
                         preferred_element_type=jnp.float32)
              + jnp.einsum('bth,hv->btv', ctx.astype(jnp.bfloat16), w_oc,
                           preferred_element_type=jnp.float32)
              + params["b_o"])
    return logits


if __name__ == "__main__":
    # Small but lane-dense shapes: H = V = E = 128 (multiple of 128 lanes),
    # T_ENC / T_DEC multiples of 8 (sublanes), B=4 -> grid of 2 batch-blocks.
    B, T_ENC, D_IN = 4, 64, 64
    HIDDEN = 128
    T_DEC, D_EMB = 32, 128
    VOCAB = 128

    key = jax.random.PRNGKey(0)
    k_enc_in, k_dec_in, k_params = jax.random.split(key, 3)

    encoder_inputs = jax.random.normal(k_enc_in, (B, T_ENC, D_IN), jnp.float32)
    decoder_inputs = jax.random.normal(k_dec_in, (B, T_DEC, D_EMB), jnp.float32)
    params = init_params(k_params, D_IN, HIDDEN, D_EMB, VOCAB)

    model = LASPallas(params)
    out = model(encoder_inputs, decoder_inputs, teacher_forcing_rate=0.9)
    out = jax.block_until_ready(out)

    assert out.shape == (B, T_DEC, VOCAB), out.shape
    assert jnp.all(jnp.isfinite(out))

    ref = _reference(encoder_inputs, decoder_inputs, params)
    max_err = float(jnp.max(jnp.abs(out - ref)))
    assert max_err < 0.1, f"max abs error vs reference: {max_err}"

    print("KERNEL_OK")
</pallas_src>

<mosaic_0001>
module attributes {stable_mosaic.version = 11 : i64} {
  func.func @_las_fused_kernel(%arg0: i32, %arg1: memref<2x64x64xbf16, #tpu.memory_space<vmem>>, %arg2: memref<2x32x128xbf16, #tpu.memory_space<vmem>>, %arg3: memref<64x128xbf16, #tpu.memory_space<vmem>>, %arg4: memref<1x128xf32, #tpu.memory_space<vmem>>, %arg5: memref<128x128xbf16, #tpu.memory_space<vmem>>, %arg6: memref<128x128xbf16, #tpu.memory_space<vmem>>, %arg7: memref<128x128xbf16, #tpu.memory_space<vmem>>, %arg8: memref<1x128xf32, #tpu.memory_space<vmem>>, %arg9: memref<2x32x128xf32, #tpu.memory_space<vmem>>) attributes {dimension_semantics = [#tpu.dimension_semantics<parallel>], iteration_bounds = array<i64: 2>, scalar_prefetch = 0 : i64, scratch_operands = 0 : i64, tpu.core_type = #tpu.core_type<tc>, window_params = [{transform_indices = @transform_0, window_bounds = array<i64: 2, 64, 64>}, {transform_indices = @transform_1, window_bounds = array<i64: 2, 32, 128>}, {pipeline_mode = #tpu.pipeline_mode<synchronous>, transform_indices = @transform_2, window_bounds = array<i64: 64, 128>}, {pipeline_mode = #tpu.pipeline_mode<synchronous>, transform_indices = @transform_3, window_bounds = array<i64: 1, 128>}, {pipeline_mode = #tpu.pipeline_mode<synchronous>, transform_indices = @transform_4, window_bounds = array<i64: 128, 128>}, {pipeline_mode = #tpu.pipeline_mode<synchronous>, transform_indices = @transform_5, window_bounds = array<i64: 128, 128>}, {pipeline_mode = #tpu.pipeline_mode<synchronous>, transform_indices = @transform_6, window_bounds = array<i64: 128, 128>}, {pipeline_mode = #tpu.pipeline_mode<synchronous>, transform_indices = @transform_7, window_bounds = array<i64: 1, 128>}, {transform_indices = @transform_8, window_bounds = array<i64: 2, 32, 128>}]} {
    %c0 = arith.constant 0 : index
    %c0_0 = arith.constant 0 : index
    %c0_1 = arith.constant 0 : index
    %0 = vector.load %arg1[%c0, %c0_0, %c0_1] : memref<2x64x64xbf16, #tpu.memory_space<vmem>>, vector<2x64x64xbf16>
    %c0_2 = arith.constant 0 : index
    %c0_3 = arith.constant 0 : index
    %c0_4 = arith.constant 0 : index
    %1 = vector.load %arg2[%c0_2, %c0_3, %c0_4] : memref<2x32x128xbf16, #tpu.memory_space<vmem>>, vector<2x32x128xbf16>
    %2 = vector.shape_cast %0 : vector<2x64x64xbf16> to vector<128x64xbf16>
    %c0_5 = arith.constant 0 : index
    %c0_6 = arith.constant 0 : index
    %3 = vector.load %arg3[%c0_5, %c0_6] : memref<64x128xbf16, #tpu.memory_space<vmem>>, vector<64x128xbf16>
    %cst = arith.constant dense<0.000000e+00> : vector<128x128xf32>
    %4 = tpu.matmul %2, %3, %cst {dimension_numbers = #tpu.dot_dimension_numbers<[1], [0], [0], [1], [0, 0, 1, 1], [], []>} : vector<128x64xbf16>, vector<64x128xbf16>, vector<128x128xf32> -> vector<128x128xf32>
    %c0_7 = arith.constant 0 : index
    %c0_8 = arith.constant 0 : index
    %5 = vector.load %arg4[%c0_7, %c0_8] : memref<1x128xf32, #tpu.memory_space<vmem>>, vector<1x128xf32>
    %6 = vector.broadcast %5 : vector<1x128xf32> to vector<128x128xf32>
    %7 = arith.addf %4, %6 : vector<128x128xf32>
    %8 = math.tanh %7 : vector<128x128xf32>
    %9 = arith.truncf %8 : vector<128x128xf32> to vector<128x128xbf16>
    %10 = vector.shape_cast %9 : vector<128x128xbf16> to vector<2x64x128xbf16>
    %11 = vector.shape_cast %1 : vector<2x32x128xbf16> to vector<64x128xbf16>
    %c0_9 = arith.constant 0 : index
    %c0_10 = arith.constant 0 : index
    %12 = vector.load %arg5[%c0_9, %c0_10] : memref<128x128xbf16, #tpu.memory_space<vmem>>, vector<128x128xbf16>
    %cst_11 = arith.constant dense<0.000000e+00> : vector<64x128xf32>
    %13 = tpu.matmul %11, %12, %cst_11 {dimension_numbers = #tpu.dot_dimension_numbers<[1], [0], [0], [1], [0, 0, 1, 1], [], []>} : vector<64x128xbf16>, vector<128x128xbf16>, vector<64x128xf32> -> vector<64x128xf32>
    %14 = arith.truncf %13 : vector<64x128xf32> to vector<64x128xbf16>
    %15 = vector.shape_cast %14 : vector<64x128xbf16> to vector<2x32x128xbf16>
    "tpu.trace_start"() <{level = 10 : i32, message = "btd,bsd->bts"}> : () -> ()
    %cst_12 = arith.constant dense<0.000000e+00> : vector<2x32x64xf32>
    %16 = tpu.matmul %15, %10, %cst_12 {dimension_numbers = #tpu.dot_dimension_numbers<[2], [2], [1], [1], [0, 0, 0, 1, 1, 1], [0], [0]>} : vector<2x32x128xbf16>, vector<2x64x128xbf16>, vector<2x32x64xf32> -> vector<2x32x64xf32>
    "tpu.trace_stop"() : () -> ()
    %cst_13 = arith.constant dense<0xFF800000> : vector<2x32xf32>
    %17 = vector.multi_reduction <maximumf>, %16, %cst_13 [2] : vector<2x32x64xf32> to vector<2x32xf32>
    %18 = vector.shape_cast %17 : vector<2x32xf32> to vector<2x32x1xf32>
    %19 = vector.broadcast %18 : vector<2x32x1xf32> to vector<2x32x64xf32>
    %20 = arith.subf %16, %19 : vector<2x32x64xf32>
    %21 = math.exp %20 : vector<2x32x64xf32>
    %cst_14 = arith.constant dense<0.000000e+00> : vector<2x32xf32>
    %22 = vector.multi_reduction <add>, %21, %cst_14 [2] : vector<2x32x64xf32> to vector<2x32xf32>
    %23 = vector.shape_cast %22 : vector<2x32xf32> to vector<2x32x1xf32>
    %24 = tpu.reciprocal %23 {approx = true} : vector<2x32x1xf32> -> vector<2x32x1xf32>
    %25 = vector.broadcast %24 : vector<2x32x1xf32> to vector<2x32x64xf32>
    %26 = arith.mulf %21, %25 : vector<2x32x64xf32>
    %27 = arith.truncf %26 : vector<2x32x64xf32> to vector<2x32x64xbf16>
    "tpu.trace_start"() <{level = 10 : i32, message = "bts,bsh->bth"}> : () -> ()
    %cst_15 = arith.constant dense<0.000000e+00> : vector<2x32x128xf32>
    %28 = tpu.matmul %27, %10, %cst_15 {dimension_numbers = #tpu.dot_dimension_numbers<[2], [1], [1], [2], [0, 0, 0, 1, 1, 2], [0], [0]>} : vector<2x32x64xbf16>, vector<2x64x128xbf16>, vector<2x32x128xf32> -> vector<2x32x128xf32>
    "tpu.trace_stop"() : () -> ()
    %29 = vector.shape_cast %15 : vector<2x32x128xbf16> to vector<64x128xbf16>
    %30 = arith.truncf %28 : vector<2x32x128xf32> to vector<2x32x128xbf16>
    %31 = vector.shape_cast %30 : vector<2x32x128xbf16> to vector<64x128xbf16>
    %c0_16 = arith.constant 0 : index
    %c0_17 = arith.constant 0 : index
    %32 = vector.load %arg6[%c0_16, %c0_17] : memref<128x128xbf16, #tpu.memory_space<vmem>>, vector<128x128xbf16>
    %cst_18 = arith.constant dense<0.000000e+00> : vector<64x128xf32>
    %33 = tpu.matmul %29, %32, %cst_18 {dimension_numbers = #tpu.dot_dimension_numbers<[1], [0], [0], [1], [0, 0, 1, 1], [], []>} : vector<64x128xbf16>, vector<128x128xbf16>, vector<64x128xf32> -> vector<64x128xf32>
    %c0_19 = arith.constant 0 : index
    %c0_20 = arith.constant 0 : index
    %34 = vector.load %arg7[%c0_19, %c0_20] : memref<128x128xbf16, #tpu.memory_space<vmem>>, vector<128x128xbf16>
    %cst_21 = arith.constant dense<0.000000e+00> : vector<64x128xf32>
    %35 = tpu.matmul %31, %34, %cst_21 {dimension_numbers = #tpu.dot_dimension_numbers<[1], [0], [0], [1], [0, 0, 1, 1], [], []>} : vector<64x128xbf16>, vector<128x128xbf16>, vector<64x128xf32> -> vector<64x128xf32>
    %36 = arith.addf %33, %35 : vector<64x128xf32>
    %c0_22 = arith.constant 0 : index
    %c0_23 = arith.constant 0 : index
    %37 = vector.load %arg8[%c0_22, %c0_23] : memref<1x128xf32, #tpu.memory_space<vmem>>, vector<1x128xf32>
    %38 = vector.broadcast %37 : vector<1x128xf32> to vector<64x128xf32>
    %39 = arith.addf %36, %38 : vector<64x128xf32>
    %40 = vector.shape_cast %39 : vector<64x128xf32> to vector<2x32x128xf32>
    %c0_24 = arith.constant 0 : index
    %c0_25 = arith.constant 0 : index
    %c0_26 = arith.constant 0 : index
    %41 = vector.load %arg9[%c0_24, %c0_25, %c0_26] : memref<2x32x128xf32, #tpu.memory_space<vmem>>, vector<2x32x128xf32>
    tpu.vector_store %arg9[%c0_24, %c0_25, %c0_26], %40 {strides = array<i32>} : memref<2x32x128xf32, #tpu.memory_space<vmem>>, vector<2x32x128xf32>,
    return
  }
  func.func @transform_0(%arg0: i32) -> (i32, i32, i32) {
    %c0_i32 = arith.constant 0 : i32
    %c0_i32_0 = arith.constant 0 : i32
    %c0_i32_1 = arith.constant 0 : i32
    return %arg0, %c0_i32, %c0_i32_0 : i32, i32, i32
  }
  func.func @transform_1(%arg0: i32) -> (i32, i32, i32) {
    %c0_i32 = arith.constant 0 : i32
    %c0_i32_0 = arith.constant 0 : i32
    %c0_i32_1 = arith.constant 0 : i32
    return %arg0, %c0_i32, %c0_i32_0 : i32, i32, i32
  }
  func.func @transform_2(%arg0: i32) -> (i32, i32) {
    %c0_i32 = arith.constant 0 : i32
    %c0_i32_0 = arith.constant 0 : i32
    %c0_i32_1 = arith.constant 0 : i32
    return %c0_i32, %c0_i32_0 : i32, i32
  }
  func.func @transform_3(%arg0: i32) -> (i32, i32) {
    %c0_i32 = arith.constant 0 : i32
    %c0_i32_0 = arith.constant 0 : i32
    %c0_i32_1 = arith.constant 0 : i32
    return %c0_i32, %c0_i32_0 : i32, i32
  }
  func.func @transform_4(%arg0: i32) -> (i32, i32) {
    %c0_i32 = arith.constant 0 : i32
    %c0_i32_0 = arith.constant 0 : i32
    %c0_i32_1 = arith.constant 0 : i32
    return %c0_i32, %c0_i32_0 : i32, i32
  }
  func.func @transform_5(%arg0: i32) -> (i32, i32) {
    %c0_i32 = arith.constant 0 : i32
    %c0_i32_0 = arith.constant 0 : i32
    %c0_i32_1 = arith.constant 0 : i32
    return %c0_i32, %c0_i32_0 : i32, i32
  }
  func.func @transform_6(%arg0: i32) -> (i32, i32) {
    %c0_i32 = arith.constant 0 : i32
    %c0_i32_0 = arith.constant 0 : i32
    %c0_i32_1 = arith.constant 0 : i32
    return %c0_i32, %c0_i32_0 : i32, i32
  }
  func.func @transform_7(%arg0: i32) -> (i32, i32) {
    %c0_i32 = arith.constant 0 : i32
    %c0_i32_0 = arith.constant 0 : i32
    %c0_i32_1 = arith.constant 0 : i32
    return %c0_i32, %c0_i32_0 : i32, i32
  }
  func.func @transform_8(%arg0: i32) -> (i32, i32, i32) {
    %c0_i32 = arith.constant 0 : i32
    %c0_i32_0 = arith.constant 0 : i32
    %c0_i32_1 = arith.constant 0 : i32
    return %arg0, %c0_i32, %c0_i32_0 : i32, i32, i32
  }
}

</mosaic_0001>

<llo_original>
// kernel: tpu_custom_call.1
$region0: #{tpu_custom_call.1}
  #allocation0 [shape = 'u32[]', space=smem, size = 0x4, offset = 0x4, fixed_abs, tag = 'smem constant byte address 0x4 - core index']
  #allocation1 [shape = 'u32[144,128]{1,0:T(1,128)}', space=vmem, size = 0x12000, scoped, tag = 'internal scratch']
  %s0 = inlined_call_operand.hbm [shape: bf16[4,64,64], index: 0, kind: input, shape index: {}]
  %s1 = inlined_call_operand.hbm [shape: bf16[4,32,128], index: 1, kind: input, shape index: {}]
  %s2 = inlined_call_operand.hbm [shape: bf16[64,128], index: 2, kind: input, shape index: {}]
  %s3 = inlined_call_operand.vmem [shape: f32[1,128], index: 3, kind: input, shape index: {}]
  %s4 = inlined_call_operand.hbm [shape: bf16[128,128], index: 4, kind: input, shape index: {}]
  %s5 = inlined_call_operand.hbm [shape: bf16[128,128], index: 5, kind: input, shape index: {}]
  %s6 = inlined_call_operand.hbm [shape: bf16[128,128], index: 6, kind: input, shape index: {}]
  %s7 = inlined_call_operand.vmem [shape: f32[1,128], index: 7, kind: input, shape index: {}]
  %s8 = inlined_call_operand.hbm [shape: f32[4,32,128], index: 8, kind: output, shape index: {}]
  %s9 = sld [smem:[#allocation0]]
  $region89: #{tpu_custom_call.1} parent=0
    _
  %s11 = ssub.s32 1, %s9
  %s12 = scalar_select 0, %s11, %s9
  $region1: #{tpu_custom_call.1} parent=0
    #allocation2 [shape = 'u8[65536]{0}', space=vmem, size = 0x10000, scoped, tag = 'input window, operand 0']
    #allocation3 [shape = 's32[2]{0}', space=sflag, size = 0x8, scoped, tag = 'scoped memory for tpu_custom_call.1']
    #allocation4 [shape = 's32[2]{0}', space=sflag, size = 0x8, scoped, tag = 'scoped memory for tpu_custom_call.1']
    #allocation5 [shape = 'u8[32768]{0}', space=vmem, size = 0x8000, scoped, tag = 'input window, operand 1']
    #allocation6 [shape = 's32[2]{0}', space=sflag, size = 0x8, scoped, tag = 'scoped memory for tpu_custom_call.1']
    #allocation7 [shape = 'u8[16384]{0}', space=vmem, size = 0x4000, scoped, tag = 'input window, operand 2, single buffered']
    #allocation8 [shape = 'u8[32768]{0}', space=vmem, size = 0x8000, scoped, tag = 'input window, operand 4, single buffered']
    #allocation9 [shape = 's32[1]{0}', space=sflag, size = 0x4, scoped, tag = 'scoped memory for tpu_custom_call.1']
    #allocation10 [shape = 'u8[32768]{0}', space=vmem, size = 0x8000, scoped, tag = 'input window, operand 5, single buffered']
    #allocation11 [shape = 'u8[32768]{0}', space=vmem, size = 0x8000, scoped, tag = 'input window, operand 6, single buffered']
    #allocation12 [shape = 's32[1]{0}', space=sflag, size = 0x4, scoped, tag = 'scoped memory for tpu_custom_call.1']
    #allocation13 [shape = 'u8[65536]{0}', space=vmem, size = 0x10000, scoped, tag = 'output window, operand 0']
    %13 = vsyncpa [#allocation3], 0
    %s14 = scalar_lea.sflag [#allocation3], 1
    %15 = vsyncpa %s14, 0
    %16 = vsyncpa [#allocation6], 0
    %s17 = scalar_lea.sflag [#allocation6], 1
    %18 = vsyncpa %s17, 0
    %19 = vsyncpa [#allocation9], 0
    %20 = vsyncpa [#allocation12], 0
    %21 = vsyncpa [#allocation4], 0
    %s22 = scalar_lea.sflag [#allocation4], 1
    %23 = vsyncpa %s22, 0
    loop: start=0, step=1, limit=4
    $region2: #{tpu_custom_call.1} parent=1 // loop_pre_header
      _
    $region3: #{tpu_custom_call.1} parent=1 // loop_header
      %s25 = sphi 0, %s29
      %p26 = scmp.ge.s32.totalorder %s25, 4
      %s35 = sphi 0, %s37
      %s38 = sphi 0, %s35
      %s39 = sphi 0, %s38
      %s55 = sphi 0, %s39
      %s61 = sphi 0, %s63
      %s64 = sphi 0, %s61
      %s65 = sphi 0, %s64
      %s81 = sphi 0, %s65
      %s85 = sphi 0, %s85
      %s87 = sphi 0, %s85
      %s88 = sphi 0, %s87
      %s102 = sphi 0, %s88
      %s106 = sphi 0, %s106
      %s108 = sphi 0, %s106
      %s109 = sphi 0, %s108
      %s123 = sphi 0, %s109
      %s127 = sphi 0, %s127
      %s129 = sphi 0, %s127
      %s130 = sphi 0, %s129
      %s144 = sphi 0, %s130
      %s148 = sphi 0, %s148
      %s150 = sphi 0, %s148
      %s151 = sphi 0, %s150
      %s165 = sphi 0, %s151
      %s169 = sphi 0, %s169
      %s171 = sphi 0, %s169
      %s172 = sphi 0, %s171
      %s186 = sphi 0, %s172
      %s190 = sphi 0, %s190
      %s192 = sphi 0, %s190
      %s193 = sphi 0, %s192
      %s207 = sphi 0, %s193
      %s213 = sphi 0, %s215
      %s216 = sphi 0, %s213
      %s217 = sphi 0, %s216
      %s233 = sphi 0, %s217
    $region4: #{tpu_custom_call.1} parent=1 // loop_header_branch
      %28 = sbr.rel (%p26) target = $region8
    $region5: #{tpu_custom_call.1} parent=1 // loop_body
      %s30 = ssub.s32 %s25, 1
      %s31 = ssub.s32 %s25, 2
      %s32 = sadd.s32 %s25, 1
      %s33 = ssub.s32 %s25, %s32
      %p34 = scmp.eq.s32.totalorder %s33, 0
      %s36 = sadd.s32 %s35, 1
      %s37 = scalar_select %p34, %s35, %s36
      %p40 = pneg %p34
      %p41 = scmp.eq.s32.totalorder %s25, 1
      %p42 = por %p40, %p41
      %p43 = scmp.ne.s32.totalorder %s35, %s38
      %p44 = scmp.eq.s32.totalorder %s25, 0
      %p45 = por %p43, %p44
      %p46 = scmp.ne.s32.totalorder %s35, %s38
      %p47 = scmp.eq.s32.totalorder %s30, 1
      %p48 = por %p46, %p47
      %p49 = scmp.ne.s32.totalorder %s38, %s39
      %p50 = scmp.eq.s32.totalorder %s30, 0
      %p51 = por %p49, %p50
      %p52 = scmp.ne.s32.totalorder %s38, %s39
      %p53 = scmp.eq.s32.totalorder %s31, 1
      %p54 = por %p52, %p53
      %p56 = scmp.ne.s32.totalorder %s39, %s55
      %p57 = scmp.eq.s32.totalorder %s31, 0
      %p58 = por %p56, %p57
      %s59 = ssub.s32 %s25, %s32
      %p60 = scmp.eq.s32.totalorder %s59, 0
      %s62 = sadd.s32 %s61, 1
      %s63 = scalar_select %p60, %s61, %s62
      %p66 = pneg %p60
      %p67 = scmp.eq.s32.totalorder %s25, 1
      %p68 = por %p66, %p67
      %p69 = scmp.ne.s32.totalorder %s61, %s64
      %p70 = scmp.eq.s32.totalorder %s25, 0
      %p71 = por %p69, %p70
      %p72 = scmp.ne.s32.totalorder %s61, %s64
      %p73 = scmp.eq.s32.totalorder %s30, 1
      %p74 = por %p72, %p73
      %p75 = scmp.ne.s32.totalorder %s64, %s65
      %p76 = scmp.eq.s32.totalorder %s30, 0
      %p77 = por %p75, %p76
      %p78 = scmp.ne.s32.totalorder %s64, %s65
      %p79 = scmp.eq.s32.totalorder %s31, 1
      %p80 = por %p78, %p79
      %p82 = scmp.ne.s32.totalorder %s65, %s81
      %p83 = scmp.eq.s32.totalorder %s31, 0
      %p84 = por %p82, %p83
      %s86 = sadd.s32 %s85, 1
      %p89 = scmp.eq.s32.totalorder %s25, 1
      %p90 = scmp.ne.s32.totalorder %s85, %s87
      %p91 = scmp.eq.s32.totalorder %s25, 0
      %p92 = por %p90, %p91
      %p93 = scmp.ne.s32.totalorder %s85, %s87
      %p94 = scmp.eq.s32.totalorder %s30, 1
      %p95 = por %p93, %p94
      %p96 = scmp.ne.s32.totalorder %s87, %s88
      %p97 = scmp.eq.s32.totalorder %s30, 0
      %p98 = por %p96, %p97
      %p99 = scmp.ne.s32.totalorder %s87, %s88
      %p100 = scmp.eq.s32.totalorder %s31, 1
      %p101 = por %p99, %p100
      %p103 = scmp.ne.s32.totalorder %s88, %s102
      %p104 = scmp.eq.s32.totalorder %s31, 0
      %p105 = por %p103, %p104
      %s107 = sadd.s32 %s106, 1
      %p110 = scmp.eq.s32.totalorder %s25, 1
      %p111 = scmp.ne.s32.totalorder %s106, %s108
      %p112 = scmp.eq.s32.totalorder %s25, 0
      %p113 = por %p111, %p112
      %p114 = scmp.ne.s32.totalorder %s106, %s108
      %p115 = scmp.eq.s32.totalorder %s30, 1
      %p116 = por %p114, %p115
      %p117 = scmp.ne.s32.totalorder %s108, %s109
      %p118 = scmp.eq.s32.totalorder %s30, 0
      %p119 = por %p117, %p118
      %p120 = scmp.ne.s32.totalorder %s108, %s109
      %p121 = scmp.eq.s32.totalorder %s31, 1
      %p122 = por %p120, %p121
      %p124 = scmp.ne.s32.totalorder %s109, %s123
      %p125 = scmp.eq.s32.totalorder %s31, 0
      %p126 = por %p124, %p125
      %s128 = sadd.s32 %s127, 1
      %p131 = scmp.eq.s32.totalorder %s25, 1
      %p132 = scmp.ne.s32.totalorder %s127, %s129
      %p133 = scmp.eq.s32.totalorder %s25, 0
      %p134 = por %p132, %p133
      %p135 = scmp.ne.s32.totalorder %s127, %s129
      %p136 = scmp.eq.s32.totalorder %s30, 1
      %p137 = por %p135, %p136
      %p138 = scmp.ne.s32.totalorder %s129, %s130
      %p139 = scmp.eq.s32.totalorder %s30, 0
      %p140 = por %p138, %p139
      %p141 = scmp.ne.s32.totalorder %s129, %s130
      %p142 = scmp.eq.s32.totalorder %s31, 1
      %p143 = por %p141, %p142
      %p145 = scmp.ne.s32.totalorder %s130, %s144
      %p146 = scmp.eq.s32.totalorder %s31, 0
      %p147 = por %p145, %p146
      %s149 = sadd.s32 %s148, 1
      %p152 = scmp.eq.s32.totalorder %s25, 1
      %p153 = scmp.ne.s32.totalorder %s148, %s150
      %p154 = scmp.eq.s32.totalorder %s25, 0
      %p155 = por %p153, %p154
      %p156 = scmp.ne.s32.totalorder %s148, %s150
      %p157 = scmp.eq.s32.totalorder %s30, 1
      %p158 = por %p156, %p157
      %p159 = scmp.ne.s32.totalorder %s150, %s151
      %p160 = scmp.eq.s32.totalorder %s30, 0
      %p161 = por %p159, %p160
      %p162 = scmp.ne.s32.totalorder %s150, %s151
      %p163 = scmp.eq.s32.totalorder %s31, 1
      %p164 = por %p162, %p163
      %p166 = scmp.ne.s32.totalorder %s151, %s165
      %p167 = scmp.eq.s32.totalorder %s31, 0
      %p168 = por %p166, %p167
      %s170 = sadd.s32 %s169, 1
      %p173 = scmp.eq.s32.totalorder %s25, 1
      %p174 = scmp.ne.s32.totalorder %s169, %s171
      %p175 = scmp.eq.s32.totalorder %s25, 0
      %p176 = por %p174, %p175
      %p177 = scmp.ne.s32.totalorder %s169, %s171
      %p178 = scmp.eq.s32.totalorder %s30, 1
      %p179 = por %p177, %p178
      %p180 = scmp.ne.s32.totalorder %s171, %s172
      %p181 = scmp.eq.s32.totalorder %s30, 0
      %p182 = por %p180, %p181
      %p183 = scmp.ne.s32.totalorder %s171, %s172
      %p184 = scmp.eq.s32.totalorder %s31, 1
      %p185 = por %p183, %p184
      %p187 = scmp.ne.s32.totalorder %s172, %s186
      %p188 = scmp.eq.s32.totalorder %s31, 0
      %p189 = por %p187, %p188
      %s191 = sadd.s32 %s190, 1
      %p194 = scmp.eq.s32.totalorder %s25, 1
      %p195 = scmp.ne.s32.totalorder %s190, %s192
      %p196 = scmp.eq.s32.totalorder %s25, 0
      %p197 = por %p195, %p196
      %p198 = scmp.ne.s32.totalorder %s190, %s192
      %p199 = scmp.eq.s32.totalorder %s30, 1
      %p200 = por %p198, %p199
      %p201 = scmp.ne.s32.totalorder %s192, %s193
      %p202 = scmp.eq.s32.totalorder %s30, 0
      %p203 = por %p201, %p202
      %p204 = scmp.ne.s32.totalorder %s192, %s193
      %p205 = scmp.eq.s32.totalorder %s31, 1
      %p206 = por %p204, %p205
      %p208 = scmp.ne.s32.totalorder %s193, %s207
      %p209 = scmp.eq.s32.totalorder %s31, 0
      %p210 = por %p208, %p209
      %s211 = ssub.s32 %s25, %s32
      %p212 = scmp.eq.s32.totalorder %s211, 0
      %s214 = sadd.s32 %s213, 1
      %s215 = scalar_select %p212, %s213, %s214
      %p218 = pneg %p212
      %p219 = scmp.eq.s32.totalorder %s25, 1
      %p220 = por %p218, %p219
      %p221 = scmp.ne.s32.totalorder %s213, %s216
      %p222 = scmp.eq.s32.totalorder %s25, 0
      %p223 = por %p221, %p222
      %p224 = scmp.ne.s32.totalorder %s213, %s216
      %p225 = scmp.eq.s32.totalorder %s30, 1
      %p226 = por %p224, %p225
      %p227 = scmp.ne.s32.totalorder %s216, %s217
      %p228 = scmp.eq.s32.totalorder %s30, 0
      %p229 = por %p227, %p228
      %p230 = scmp.ne.s32.totalorder %s216, %s217
      %p231 = scmp.eq.s32.totalorder %s31, 1
      %p232 = por %p230, %p231
      %p234 = scmp.ne.s32.totalorder %s217, %s233
      %p235 = scmp.eq.s32.totalorder %s31, 0
      %p236 = por %p234, %p235
      %p237 = scmp.le.s32.totalorder 1, %s25
      %p238 = scmp.lt.s32.totalorder %s25, 3
      %p239 = pnand %p237, %p238
      %p240 = pneg %p239
      // Predicated region
      $region9: #{tpu_custom_call.1} parent=5 // pred_check
        _
      $region10: #{tpu_custom_call.1} parent=5 // pred_check_branch
        %242 = sbr.rel (%p239) target = $region12
      $region11: #{tpu_custom_call.1} parent=5 // pred_region
        %s243 = ssub.s32 %s25, 1
        // Predicated region
        $region13: #{tpu_custom_call.1} parent=11 // pred_check
          %p244 = pneg %p98
        $region14: #{tpu_custom_call.1} parent=11 // pred_check_branch
          %246 = sbr.rel (%p244) target = $region16
        $region15: #{tpu_custom_call.1} parent=11 // pred_region
          %s248 = ssub.s32 512, 512
          %249 = vsyncadd [#allocation6], %s248
          %s250 = sshll.u32 [#allocation7], 4
          %s251 = int_to_ptr.vmem [resolvable:$true] %s250
          %256 = dma.hbm_to_vmem [thread:$0]  %s2, 512, %s251, [#allocation6], 64, 64, 4
        $region16: #{tpu_custom_call.1} parent=11 // pred_fallthru
          _
        // Predicated region
        $region17: #{tpu_custom_call.1} parent=11 // pred_check
          %p257 = pneg %p119
        $region18: #{tpu_custom_call.1} parent=11 // pred_check_branch
          %259 = sbr.rel (%p257) target = $region20
        $region19: #{tpu_custom_call.1} parent=11 // pred_region
          _
        $region20: #{tpu_custom_call.1} parent=11 // pred_fallthru
          _
        // Predicated region
        $region21: #{tpu_custom_call.1} parent=11 // pred_check
          %p260 = pneg %p140
        $region22: #{tpu_custom_call.1} parent=11 // pred_check_branch
          %262 = sbr.rel (%p260) target = $region24
        $region23: #{tpu_custom_call.1} parent=11 // pred_region
          %s264 = ssub.s32 1024, 1024
          %265 = vsyncadd [#allocation9], %s264
          %s266 = sshll.u32 [#allocation8], 4
          %s267 = int_to_ptr.vmem [resolvable:$true] %s266
          %272 = dma.hbm_to_vmem [thread:$0]  %s4, 1024, %s267, [#allocation9], 64, 64, 4
        $region24: #{tpu_custom_call.1} parent=11 // pred_fallthru
          _
        // Predicated region
        $region25: #{tpu_custom_call.1} parent=11 // pred_check
          %p273 = pneg %p161
        $region26: #{tpu_custom_call.1} parent=11 // pred_check_branch
          %275 = sbr.rel (%p273) target = $region28
        $region27: #{tpu_custom_call.1} parent=11 // pred_region
          %s277 = ssub.s32 1024, 1024
          %278 = vsyncadd [#allocation9], %s277
          %s279 = sshll.u32 [#allocation10], 4
          %s280 = int_to_ptr.vmem [resolvable:$true] %s279
          %285 = dma.hbm_to_vmem [thread:$0]  %s5, 1024, %s280, [#allocation9], 64, 64, 4
        $region28: #{tpu_custom_call.1} parent=11 // pred_fallthru
          _
        // Predicated region
        $region29: #{tpu_custom_call.1} parent=11 // pred_check
          %p286 = pneg %p182
        $region30: #{tpu_custom_call.1} parent=11 // pred_check_branch
          %288 = sbr.rel (%p286) target = $region32
        $region31: #{tpu_custom_call.1} parent=11 // pred_region
          %s290 = ssub.s32 1024, 1024
          %291 = vsyncadd [#allocation12], %s290
          %s292 = sshll.u32 [#allocation11], 4
          %s293 = int_to_ptr.vmem [resolvable:$true] %s292
          %298 = dma.hbm_to_vmem [thread:$0]  %s6, 1024, %s293, [#allocation12], 64, 64, 4
        $region32: #{tpu_custom_call.1} parent=11 // pred_fallthru
          _
        // Predicated region
        $region33: #{tpu_custom_call.1} parent=11 // pred_check
          %p299 = pneg %p203
        $region34: #{tpu_custom_call.1} parent=11 // pred_check_branch
          %301 = sbr.rel (%p299) target = $region36
        $region35: #{tpu_custom_call.1} parent=11 // pred_region
          _
        $region36: #{tpu_custom_call.1} parent=11 // pred_fallthru
          _
      $region12: #{tpu_custom_call.1} parent=5 // pred_fallthru
        _
      %p302 = scmp.lt.s32.totalorder %s25, 2
      // Predicated region
      $region37: #{tpu_custom_call.1} parent=5 // pred_check
        %p303 = pneg %p302
      $region38: #{tpu_custom_call.1} parent=5 // pred_check_branch
        %305 = sbr.rel (%p303) target = $region40
      $region39: #{tpu_custom_call.1} parent=5 // pred_region
        // Predicated region
        $region41: #{tpu_custom_call.1} parent=39 // pred_check
          %p306 = pneg %p45
        $region42: #{tpu_custom_call.1} parent=39 // pred_check_branch
          %308 = sbr.rel (%p306) target = $region44
        $region43: #{tpu_custom_call.1} parent=39 // pred_region
          %s309 = sand.u32 %s35, 1
          %s310 = scalar_lea.sflag [#allocation3], %s309
          %s311 = sand.u32 %s35, 1
          %s312 = smul.addr %s311, 64
          %s313 = scalar_lea.vmem [#allocation2], %s312
          %s314 = smul.u32 2, %s25
          %s316 = ssub.s32 1024, 1024
          %317 = vsyncadd %s310, %s316
          %s318 = smul.addr %s314, 8
          %s319 = smul.addr %s318, 64
          %s320 = scalar_lea.hbm %s0, %s319
          %s321 = sshll.u32 %s313, 4
          %s322 = int_to_ptr.vmem [resolvable:$true] %s321
          %327 = dma.hbm_to_vmem [thread:$0]  %s320, 1024, %s322, %s310, 64, 64, 4
        $region44: #{tpu_custom_call.1} parent=39 // pred_fallthru
          _
        // Predicated region
        $region45: #{tpu_custom_call.1} parent=39 // pred_check
          %p328 = pneg %p71
        $region46: #{tpu_custom_call.1} parent=39 // pred_check_branch
          %330 = sbr.rel (%p328) target = $region48
        $region47: #{tpu_custom_call.1} parent=39 // pred_region
          %s331 = sand.u32 %s25, 1
          %s332 = scalar_lea.sflag [#allocation6], %s331
          %s333 = sand.u32 %s61, 1
          %s334 = smul.addr %s333, 32
          %s335 = scalar_lea.vmem [#allocation5], %s334
          %s336 = smul.u32 2, %s25
          %s338 = ssub.s32 512, 512
          %339 = vsyncadd %s332, %s338
          %s340 = smul.addr %s336, 4
          %s341 = smul.addr %s340, 64
          %s342 = scalar_lea.hbm %s1, %s341
          %s343 = sshll.u32 %s335, 4
          %s344 = int_to_ptr.vmem [resolvable:$true] %s343
          %349 = dma.hbm_to_vmem [thread:$0]  %s342, 512, %s344, %s332, 64, 64, 4
        $region48: #{tpu_custom_call.1} parent=39 // pred_fallthru
          _
      $region40: #{tpu_custom_call.1} parent=5 // pred_fallthru
        _
      %p350 = scmp.le.s32.totalorder 1, %s25
      %p351 = scmp.lt.s32.totalorder %s25, 3
      %p352 = pnand %p350, %p351
      %p353 = pneg %p352
      // Predicated region
      $region49: #{tpu_custom_call.1} parent=5 // pred_check
        _
      $region50: #{tpu_custom_call.1} parent=5 // pred_check_branch
        %355 = sbr.rel (%p352) target = $region52
      $region51: #{tpu_custom_call.1} parent=5 // pred_region
        %s356 = ssub.s32 %s25, 1
        %s357 = sand.u32 %s38, 1
        %s358 = scalar_lea.sflag [#allocation3], %s357
        %s359 = sand.u32 %s38, 1
        %s360 = smul.addr %s359, 64
        %s361 = scalar_lea.vmem [#allocation2], %s360
        // Predicated region
        $region53: #{tpu_custom_call.1} parent=51 // pred_check
          %p362 = pneg %p51
        $region54: #{tpu_custom_call.1} parent=51 // pred_check_branch
          %364 = sbr.rel (%p362) target = $region56
        $region55: #{tpu_custom_call.1} parent=51 // pred_region
          %365 = dma.done %s358, 1024
        $region56: #{tpu_custom_call.1} parent=51 // pred_fallthru
          _
        %s366 = sand.u32 %s30, 1
        %s367 = scalar_lea.sflag [#allocation6], %s366
        %s368 = sand.u32 %s64, 1
        %s369 = smul.addr %s368, 32
        %s370 = scalar_lea.vmem [#allocation5], %s369
        // Predicated region
        $region57: #{tpu_custom_call.1} parent=51 // pred_check
          %p371 = pneg %p77
        $region58: #{tpu_custom_call.1} parent=51 // pred_check_branch
          %373 = sbr.rel (%p371) target = $region60
        $region59: #{tpu_custom_call.1} parent=51 // pred_region
          %374 = dma.done %s367, 512
        $region60: #{tpu_custom_call.1} parent=51 // pred_fallthru
          _
        // Predicated region
        $region61: #{tpu_custom_call.1} parent=51 // pred_check
          %p375 = pneg %p98
        $region62: #{tpu_custom_call.1} parent=51 // pred_check_branch
          %377 = sbr.rel (%p375) target = $region64
        $region63: #{tpu_custom_call.1} parent=51 // pred_region
          %378 = dma.done [#allocation6], 512
        $region64: #{tpu_custom_call.1} parent=51 // pred_fallthru
          _
        // Predicated region
        $region65: #{tpu_custom_call.1} parent=51 // pred_check
          %p379 = pneg %p140
        $region66: #{tpu_custom_call.1} parent=51 // pred_check_branch
          %381 = sbr.rel (%p379) target = $region68
        $region67: #{tpu_custom_call.1} parent=51 // pred_region
          %382 = dma.done [#allocation9], 1024
        $region68: #{tpu_custom_call.1} parent=51 // pred_fallthru
          _
        // Predicated region
        $region69: #{tpu_custom_call.1} parent=51 // pred_check
          %p383 = pneg %p161
        $region70: #{tpu_custom_call.1} parent=51 // pred_check_branch
          %385 = sbr.rel (%p383) target = $region72
        $region71: #{tpu_custom_call.1} parent=51 // pred_region
          %386 = dma.done [#allocation9], 1024
        $region72: #{tpu_custom_call.1} parent=51 // pred_fallthru
          _
        // Predicated region
        $region73: #{tpu_custom_call.1} parent=51 // pred_check
          %p387 = pneg %p182
        $region74: #{tpu_custom_call.1} parent=51 // pred_check_branch
          %389 = sbr.rel (%p387) target = $region76
        $region75: #{tpu_custom_call.1} parent=51 // pred_region
          %390 = dma.done [#allocation12], 1024
        $region76: #{tpu_custom_call.1} parent=51 // pred_fallthru
          _
        %s391 = sand.u32 %s38, 1
        %s392 = scalar_lea.sflag [#allocation3], %s391
        %s393 = sand.u32 %s38, 1
        %s394 = smul.addr %s393, 64
        %s395 = scalar_lea.vmem [#allocation2], %s394
        %p396 = pneg %p51
        %p397 = pneg %p48
        %s398 = sand.u32 %s30, 1
        %s399 = scalar_lea.sflag [#allocation6], %s398
        %s400 = sand.u32 %s64, 1
        %s401 = smul.addr %s400, 32
        %s402 = scalar_lea.vmem [#allocation5], %s401
        %p403 = pneg %p77
        %p404 = pneg %p74
        %p405 = pneg %p98
        %p406 = pneg %p95
        %p407 = pneg %p119
        %p408 = pneg %p116
        %p409 = pneg %p140
        %p410 = pneg %p137
        %p411 = pneg %p161
        %p412 = pneg %p158
        %p413 = pneg %p182
        %p414 = pneg %p179
        %p415 = pneg %p203
        %p416 = pneg %p200
        %p417 = pneg %p229
        %p418 = pneg %p226
        %s419 = sand.u32 %s216, 1
        %s420 = scalar_lea.sflag [#allocation4], %s419
        %s421 = sand.u32 %s216, 1
        %s422 = smul.addr %s421, 64
        %s423 = scalar_lea.vmem [#allocation13], %s422
        %s424 = smul.u32 2, %s30
        %s425 = smul.u32 2, %s30
        %s426 = smul.u32 2, %s30
        %v428 = vld [vmem:[%s361] sm:$0xf]
        %v429 = vld [vmem:[%s361 + $0x4] sm:$0xf]
        %v430 = vld [vmem:[%s361 + $0x8] sm:$0xf]
        %v431 = vld [vmem:[%s361 + $0xc] sm:$0xf]
        %v432 = vld [vmem:[%s361 + $0x10] sm:$0xf]
        %v433 = vld [vmem:[%s361 + $0x14] sm:$0xf]
        %v434 = vld [vmem:[%s361 + $0x18] sm:$0xf]
        %v435 = vld [vmem:[%s361 + $0x1c] sm:$0xf]
        %v436 = vld [vmem:[%s361 + $0x20] sm:$0xf]
        %v437 = vld [vmem:[%s361 + $0x24] sm:$0xf]
        %v438 = vld [vmem:[%s361 + $0x28] sm:$0xf]
        %v439 = vld [vmem:[%s361 + $0x2c] sm:$0xf]
        %v440 = vld [vmem:[%s361 + $0x30] sm:$0xf]
        %v441 = vld [vmem:[%s361 + $0x34] sm:$0xf]
        %v442 = vld [vmem:[%s361 + $0x38] sm:$0xf]
        %v443 = vld [vmem:[%s361 + $0x3c] sm:$0xf]
        %v444 = vld [vmem:[%s370] sm:$0xf]
        %v445 = vld [vmem:[%s370 + $0x4] sm:$0xf]
        %v446 = vld [vmem:[%s370 + $0x8] sm:$0xf]
        %v447 = vld [vmem:[%s370 + $0xc] sm:$0xf]
        %v448 = vld [vmem:[%s370 + $0x10] sm:$0xf]
        %v449 = vld [vmem:[%s370 + $0x14] sm:$0xf]
        %v450 = vld [vmem:[%s370 + $0x18] sm:$0xf]
        %v451 = vld [vmem:[%s370 + $0x1c] sm:$0xf]
        %v452 = vld [vmem:[#allocation7] sm:$0xf]
        %v453 = vld [vmem:[#allocation7 + $0x4] sm:$0xf]
        %v454 = vld [vmem:[#allocation7 + $0x8] sm:$0xf]
        %v455 = vld [vmem:[#allocation7 + $0xc] sm:$0xf]
        %v456 = vld [vmem:[#allocation7 + $0x10] sm:$0xf]
        %v457 = vld [vmem:[#allocation7 + $0x14] sm:$0xf]
        %v458 = vld [vmem:[#allocation7 + $0x18] sm:$0xf]
        %v459 = vld [vmem:[#allocation7 + $0x1c] sm:$0xf]
        %v460 = vld [vmem:[%s3] sm:$0x1]
        %v462 = vlaneseq
        %v463 = vshrl.u32 %v462, 7
        %v464 = vsub.s32 0, %v463
        %v465 = vrot.slane %v460, %v464
        %v483 = vunpack.c.l.b16 %v428
        %v484 = vunpack.c.l.b16 %v429
        %v485 = vunpack.c.l.b16 %v430
        %v486 = vunpack.c.l.b16 %v431
        %v487 = vunpack.c.l.b16 %v432
        %v488 = vunpack.c.l.b16 %v433
        %v489 = vunpack.c.l.b16 %v434
        %v490 = vunpack.c.l.b16 %v435
        %v491 = vunpack.c.l.b16 %v436
        %v492 = vunpack.c.l.b16 %v437
        %v493 = vunpack.c.l.b16 %v438
        %v494 = vunpack.c.l.b16 %v439
        %v495 = vunpack.c.l.b16 %v440
        %v496 = vunpack.c.l.b16 %v441
        %v497 = vunpack.c.l.b16 %v442
        %v498 = vunpack.c.l.b16 %v443
        %v499 = vpack.c.b16 %v484, %v483
        %v500 = vpack.c.b16 %v486, %v485
        %v501 = vpack.c.b16 %v488, %v487
        %v502 = vpack.c.b16 %v490, %v489
        %v503 = vpack.c.b16 %v492, %v491
        %v504 = vpack.c.b16 %v494, %v493
        %v505 = vpack.c.b16 %v496, %v495
        %v506 = vpack.c.b16 %v498, %v497
        %v515 = vunpack.c.l.b16 %v452
        %v516 = vunpack.c.l.b16 %v453
        %v517 = vunpack.c.l.b16 %v454
        %v518 = vunpack.c.l.b16 %v455
        %v519 = vunpack.c.l.b16 %v456
        %v520 = vunpack.c.l.b16 %v457
        %v521 = vunpack.c.l.b16 %v458
        %v522 = vunpack.c.l.b16 %v459
        %v523 = vpack.c.b16 %v516, %v515
        %v524 = vpack.c.b16 %v518, %v517
        %v525 = vpack.c.b16 %v520, %v519
        %v526 = vpack.c.b16 %v522, %v521
        %vm531 = vcmask 523264
        %v533 = vsel %vm531, %v499, 0
        %v536 = vsel %vm531, %v500, 0
        %v539 = vsel %vm531, %v501, 0
        %v542 = vsel %vm531, %v502, 0
        %v545 = vsel %vm531, %v503, 0
        %v548 = vsel %vm531, %v504, 0
        %v551 = vsel %vm531, %v505, 0
        %v554 = vsel %vm531, %v506, 0
        %556 = vmatprep.subr.bf16.mxu0 0
        %557 = vmatpush1.bf16.msra.mxu0 0
        %558 = vmatprep.subr.bf16.mxu0 0
        %559 = vmatpush1.bf16.msra.mxu0 0
        %560 = vmatprep.subr.bf16.mxu0 0
        %561 = vmatpush1.bf16.msra.mxu0 0
        %562 = vmatprep.subr.bf16.mxu0 0
        %563 = vmatpush1.bf16.msra.mxu0 0
        %564 = vmatprep.subr.bf16.mxu0 0
        %565 = vmatpush1.bf16.msra.mxu0 %v526
        %566 = vmatprep.subr.bf16.mxu0 0
        %567 = vmatpush1.bf16.msra.mxu0 %v525
        %568 = vmatprep.subr.bf16.mxu0 0
        %569 = vmatpush1.bf16.msra.mxu0 %v524
        %570 = vmatprep.subr.bf16.mxu0 0
        %571 = vmatpush1.bf16.msra.mxu0 %v523
        %572 = vmatprep.subr.bf16.mxu0 0
        %573 = vmatpush2.bf16.msra.mxu0 0
        %574 = vmatprep.subr.bf16.mxu0 0
        %575 = vmatpush2.bf16.msra.mxu0 0
        %576 = vmatprep.subr.bf16.mxu0 0
        %577 = vmatpush2.bf16.msra.mxu0 0
        %578 = vmatprep.subr.bf16.mxu0 0
        %579 = vmatpush2.bf16.msra.mxu0 0
        %580 = vmatprep.subr.bf16.mxu0 0
        %581 = vmatpush2.bf16.msra.mxu0 0
        %582 = vmatprep.subr.bf16.mxu0 0
        %583 = vmatpush2.bf16.msra.mxu0 0
        %584 = vmatprep.subr.bf16.mxu0 0
        %585 = vmatpush2.bf16.msra.mxu0 0
        %586 = vmatprep.subr.bf16.mxu0 0
        %587 = vmatpush2.bf16.msra.mxu0 0
        %588 = vmatprep.mubr.bf16.mxu0 0
        %589 = vmatmul.mubr.bf16.gmra.mxu0 %v533
        %v590 = vpop.f32.mrf.mxu0
        %v591 = vadd.f32 %v465, %v590
        %v592 = vpop.f32.mrf.mxu0
        %v593 = vpop.f32.mrf.mxu0
        %v594 = vadd.f32 %v465, %v593
        %v595 = vpop.f32.mrf.mxu0
        %596 = vmatprep.mubr.bf16.mxu0 0
        %597 = vmatmul.mubr.bf16.gmra.mxu0 %v536
        %v598 = vpop.f32.mrf.mxu0
        %v599 = vadd.f32 %v465, %v598
        %v600 = vpop.f32.mrf.mxu0
        %v601 = vpop.f32.mrf.mxu0
        %v602 = vadd.f32 %v465, %v601
        %v603 = vpop.f32.mrf.mxu0
        %604 = vmatprep.mubr.bf16.mxu0 0
        %605 = vmatmul.mubr.bf16.gmra.mxu0 %v539
        %v606 = vpop.f32.mrf.mxu0
        %v607 = vadd.f32 %v465, %v606
        %v608 = vpop.f32.mrf.mxu0
        %v609 = vpop.f32.mrf.mxu0
        %v610 = vadd.f32 %v465, %v609
        %v611 = vpop.f32.mrf.mxu0
        %612 = vmatprep.mubr.bf16.mxu0 0
        %613 = vmatmul.mubr.bf16.gmra.mxu0 %v542
        %v614 = vpop.f32.mrf.mxu0
        %v615 = vadd.f32 %v465, %v614
        %v616 = vpop.f32.mrf.mxu0
        %v617 = vpop.f32.mrf.mxu0
        %v618 = vadd.f32 %v465, %v617
        %v619 = vpop.f32.mrf.mxu0
        %620 = vmatprep.mubr.bf16.mxu0 0
        %621 = vmatmul.mubr.bf16.gmra.mxu0 %v545
        %v622 = vpop.f32.mrf.mxu0
        %v623 = vadd.f32 %v465, %v622
        %v624 = vpop.f32.mrf.mxu0
        %v625 = vpop.f32.mrf.mxu0
        %v626 = vadd.f32 %v465, %v625
        %v627 = vpop.f32.mrf.mxu0
        %628 = vmatprep.mubr.bf16.mxu0 0
        %629 = vmatmul.mubr.bf16.gmra.mxu0 %v548
        %v630 = vpop.f32.mrf.mxu0
        %v631 = vadd.f32 %v465, %v630
        %v632 = vpop.f32.mrf.mxu0
        %v633 = vpop.f32.mrf.mxu0
        %v634 = vadd.f32 %v465, %v633
        %v635 = vpop.f32.mrf.mxu0
        %636 = vmatprep.mubr.bf16.mxu0 0
        %637 = vmatmul.mubr.bf16.gmra.mxu0 %v551
        %v638 = vpop.f32.mrf.mxu0
        %v639 = vadd.f32 %v465, %v638
        %v640 = vpop.f32.mrf.mxu0
        %v641 = vpop.f32.mrf.mxu0
        %v642 = vadd.f32 %v465, %v641
        %v643 = vpop.f32.mrf.mxu0
        %644 = vmatprep.mubr.bf16.mxu0 0
        %645 = vmatmul.mubr.bf16.gmra.mxu0 %v554
        %v646 = vpop.f32.mrf.mxu0
        %v647 = vadd.f32 %v465, %v646
        %v648 = vpop.f32.mrf.mxu0
        %v649 = vpop.f32.mrf.mxu0
        %v650 = vadd.f32 %v465, %v649
        %v651 = vpop.f32.mrf.mxu0
        %652 = vdwg.mxu0
        %v653 = vtanh.pop %v591
        %v654 = vtanh.pop %v594
        %v655 = vtanh.pop %v599
        %v656 = vtanh.pop %v602
        %v657 = vtanh.pop %v607
        %v658 = vtanh.pop %v610
        %v659 = vtanh.pop %v615
        %v660 = vtanh.pop %v618
        %v661 = vtanh.pop %v623
        %v662 = vtanh.pop %v626
        %v663 = vtanh.pop %v631
        %v664 = vtanh.pop %v634
        %v665 = vtanh.pop %v639
        %v666 = vtanh.pop %v642
        %v667 = vtanh.pop %v647
        %v668 = vtanh.pop %v650
        %v669 = vpack.c.bf16 %v654, %v653
        %v670 = vpack.c.bf16 %v656, %v655
        %v671 = vpack.c.bf16 %v658, %v657
        %v672 = vpack.c.bf16 %v660, %v659
        %v673 = vpack.c.bf16 %v662, %v661
        %v674 = vpack.c.bf16 %v664, %v663
        %v675 = vpack.c.bf16 %v666, %v665
        %v676 = vpack.c.bf16 %v668, %v667
        %v677 = vld [vmem:[#allocation8] sm:$0xf]
        %v678 = vld [vmem:[#allocation8 + $0x4] sm:$0xf]
        %v679 = vld [vmem:[#allocation8 + $0x8] sm:$0xf]
        %v680 = vld [vmem:[#allocation8 + $0xc] sm:$0xf]
        %v681 = vld [vmem:[#allocation8 + $0x10] sm:$0xf]
        %v682 = vld [vmem:[#allocation8 + $0x14] sm:$0xf]
        %v683 = vld [vmem:[#allocation8 + $0x18] sm:$0xf]
        %v684 = vld [vmem:[#allocation8 + $0x1c] sm:$0xf]
        %v685 = vld [vmem:[#allocation8 + $0x20] sm:$0xf]
        %v686 = vld [vmem:[#allocation8 + $0x24] sm:$0xf]
        %v687 = vld [vmem:[#allocation8 + $0x28] sm:$0xf]
        %v688 = vld [vmem:[#allocation8 + $0x2c] sm:$0xf]
        %v689 = vld [vmem:[#allocation8 + $0x30] sm:$0xf]
        %v690 = vld [vmem:[#allocation8 + $0x34] sm:$0xf]
        %v691 = vld [vmem:[#allocation8 + $0x38] sm:$0xf]
        %v692 = vld [vmem:[#allocation8 + $0x3c] sm:$0xf]
        %v701 = vunpack.c.l.b16 %v444
        %v702 = vunpack.c.l.b16 %v445
        %v703 = vunpack.c.l.b16 %v446
        %v704 = vunpack.c.l.b16 %v447
        %v705 = vunpack.c.l.b16 %v448
        %v706 = vunpack.c.l.b16 %v449
        %v707 = vunpack.c.l.b16 %v450
        %v708 = vunpack.c.l.b16 %v451
        %v709 = vpack.c.b16 %v702, %v701
        %v710 = vpack.c.b16 %v704, %v703
        %v711 = vpack.c.b16 %v706, %v705
        %v712 = vpack.c.b16 %v708, %v707
        %v733 = vunpack.c.l.b16 %v677
        %v734 = vunpack.c.l.b16 %v678
        %v735 = vunpack.c.l.b16 %v679
        %v736 = vunpack.c.l.b16 %v680
        %v737 = vunpack.c.l.b16 %v681
        %v738 = vunpack.c.l.b16 %v682
        %v739 = vunpack.c.l.b16 %v683
        %v740 = vunpack.c.l.b16 %v684
        %v741 = vunpack.c.l.b16 %v685
        %v742 = vunpack.c.l.b16 %v686
        %v743 = vunpack.c.l.b16 %v687
        %v744 = vunpack.c.l.b16 %v688
        %v745 = vunpack.c.l.b16 %v689
        %v746 = vunpack.c.l.b16 %v690
        %v747 = vunpack.c.l.b16 %v691
        %v748 = vunpack.c.l.b16 %v692
        %v749 = vpack.c.b16 %v734, %v733
        %v750 = vpack.c.b16 %v736, %v735
        %v751 = vpack.c.b16 %v738, %v737
        %v752 = vpack.c.b16 %v740, %v739
        %v753 = vpack.c.b16 %v742, %v741
        %v754 = vpack.c.b16 %v744, %v743
        %v755 = vpack.c.b16 %v746, %v745
        %v756 = vpack.c.b16 %v748, %v747
        %765 = vmatprep.subr.bf16.mxu0 0
        %766 = vmatpush1.bf16.msra.mxu0 %v756
        %767 = vmatprep.subr.bf16.mxu0 0
        %768 = vmatpush1.bf16.msra.mxu0 %v755
        %769 = vmatprep.subr.bf16.mxu0 0
        %770 = vmatpush1.bf16.msra.mxu0 %v754
        %771 = vmatprep.subr.bf16.mxu0 0
        %772 = vmatpush1.bf16.msra.mxu0 %v753
        %773 = vmatprep.subr.bf16.mxu0 0
        %774 = vmatpush1.bf16.msra.mxu0 %v752
        %775 = vmatprep.subr.bf16.mxu0 0
        %776 = vmatpush1.bf16.msra.mxu0 %v751
        %777 = vmatprep.subr.bf16.mxu0 0
        %778 = vmatpush1.bf16.msra.mxu0 %v750
        %779 = vmatprep.subr.bf16.mxu0 0
        %780 = vmatpush1.bf16.msra.mxu0 %v749
        %781 = vmatprep.subr.bf16.mxu0 0
        %782 = vmatpush2.bf16.msra.mxu0 0
        %783 = vmatprep.subr.bf16.mxu0 0
        %784 = vmatpush2.bf16.msra.mxu0 0
        %785 = vmatprep.subr.bf16.mxu0 0
        %786 = vmatpush2.bf16.msra.mxu0 0
        %787 = vmatprep.subr.bf16.mxu0 0
        %788 = vmatpush2.bf16.msra.mxu0 0
        %789 = vmatprep.subr.bf16.mxu0 0
        %790 = vmatpush2.bf16.msra.mxu0 0
        %791 = vmatprep.subr.bf16.mxu0 0
        %792 = vmatpush2.bf16.msra.mxu0 0
        %793 = vmatprep.subr.bf16.mxu0 0
        %794 = vmatpush2.bf16.msra.mxu0 0
        %795 = vmatprep.subr.bf16.mxu0 0
        %796 = vmatpush2.bf16.msra.mxu0 0
        %797 = vmatprep.mubr.bf16.mxu0 0
        %798 = vmatmul.mubr.bf16.gmra.mxu0 %v709
        %v799 = vpop.f32.mrf.mxu0
        %v800 = vadd.f32 0.0, %v799
        %v801 = vpop.f32.mrf.mxu0
        %v802 = vpop.f32.mrf.mxu0
        %v803 = vadd.f32 0.0, %v802
        %v804 = vpop.f32.mrf.mxu0
        %805 = vmatprep.mubr.bf16.mxu0 0
        %806 = vmatmul.mubr.bf16.gmra.mxu0 %v710
        %v807 = vpop.f32.mrf.mxu0
        %v808 = vadd.f32 0.0, %v807
        %v809 = vpop.f32.mrf.mxu0
        %v810 = vpop.f32.mrf.mxu0
        %v811 = vadd.f32 0.0, %v810
        %v812 = vpop.f32.mrf.mxu0
        %813 = vmatprep.mubr.bf16.mxu0 0
        %814 = vmatmul.mubr.bf16.gmra.mxu0 %v711
        %v815 = vpop.f32.mrf.mxu0
        %v816 = vadd.f32 0.0, %v815
        %v817 = vpop.f32.mrf.mxu0
        %v818 = vpop.f32.mrf.mxu0
        %v819 = vadd.f32 0.0, %v818
        %v820 = vpop.f32.mrf.mxu0
        %821 = vmatprep.mubr.bf16.mxu0 0
        %822 = vmatmul.mubr.bf16.gmra.mxu0 %v712
        %v823 = vpop.f32.mrf.mxu0
        %v824 = vadd.f32 0.0, %v823
        %v825 = vpop.f32.mrf.mxu0
        %v826 = vpop.f32.mrf.mxu0
        %v827 = vadd.f32 0.0, %v826
        %v828 = vpop.f32.mrf.mxu0
        %829 = vdwg.mxu0
        %v830 = vpack.c.bf16 %v803, %v800
        %v831 = vpack.c.bf16 %v811, %v808
        %v832 = vpack.c.bf16 %v819, %v816
        %v833 = vpack.c.bf16 %v827, %v824
        %834 = vmatprep.subr.bf16.mxu0 0
        %835 = vmatpush1.bf16.xpose.msra.mxu0 0
        %836 = vmatprep.subr.bf16.mxu0 0
        %837 = vmatpush1.bf16.xpose.msra.mxu0 0
        %838 = vmatprep.subr.bf16.mxu0 0
        %839 = vmatpush1.bf16.xpose.msra.mxu0 0
        %840 = vmatprep.subr.bf16.mxu0 0
        %841 = vmatpush1.bf16.xpose.msra.mxu0 0
        %842 = vmatprep.subr.bf16.mxu0 0
        %843 = vmatpush1.bf16.xpose.msra.mxu0 %v672
        %844 = vmatprep.subr.bf16.mxu0 0
        %845 = vmatpush1.bf16.xpose.msra.mxu0 %v671
        %846 = vmatprep.subr.bf16.mxu0 0
        %847 = vmatpush1.bf16.xpose.msra.mxu0 %v670
        %848 = vmatprep.subr.bf16.mxu0 0
        %849 = vmatpush1.bf16.xpose.msra.mxu0 %v669
        %850 = vmatprep.subr.bf16.mxu0 0
        %851 = vmatpush2.bf16.xpose.msra.mxu0 0
        %852 = vmatprep.subr.bf16.mxu0 0
        %853 = vmatpush2.bf16.xpose.msra.mxu0 0
        %854 = vmatprep.subr.bf16.mxu0 0
        %855 = vmatpush2.bf16.xpose.msra.mxu0 0
        %856 = vmatprep.subr.bf16.mxu0 0
        %857 = vmatpush2.bf16.xpose.msra.mxu0 0
        %858 = vmatprep.subr.bf16.mxu0 0
        %859 = vmatpush2.bf16.xpose.msra.mxu0 0
        %860 = vmatprep.subr.bf16.mxu0 0
        %861 = vmatpush2.bf16.xpose.msra.mxu0 0
        %862 = vmatprep.subr.bf16.mxu0 0
        %863 = vmatpush2.bf16.xpose.msra.mxu0 0
        %864 = vmatprep.subr.bf16.mxu0 0
        %865 = vmatpush2.bf16.xpose.msra.mxu0 0
        %866 = vmatprep.mubr.bf16.mxu0 0
        %867 = vmatmul.mubr.bf16.gmra.mxu0 %v830
        %v868 = vpop.f32.mrf.mxu0
        %v869 = vadd.f32 0.0, %v868
        %v870 = vpop.f32.mrf.mxu0
        %v871 = vpop.f32.mrf.mxu0
        %v872 = vadd.f32 0.0, %v871
        %v873 = vpop.f32.mrf.mxu0
        %874 = vmatprep.mubr.bf16.mxu0 0
        %875 = vmatmul.mubr.bf16.gmra.mxu0 %v831
        %v876 = vpop.f32.mrf.mxu0
        %v877 = vadd.f32 0.0, %v876
        %v878 = vpop.f32.mrf.mxu0
        %v879 = vpop.f32.mrf.mxu0
        %v880 = vadd.f32 0.0, %v879
        %v881 = vpop.f32.mrf.mxu0
        %882 = vdwg.mxu0
        %883 = vmatprep.subr.bf16.mxu0 0
        %884 = vmatpush1.bf16.xpose.msra.mxu0 0
        %885 = vmatprep.subr.bf16.mxu0 0
        %886 = vmatpush1.bf16.xpose.msra.mxu0 0
        %887 = vmatprep.subr.bf16.mxu0 0
        %888 = vmatpush1.bf16.xpose.msra.mxu0 0
        %889 = vmatprep.subr.bf16.mxu0 0
        %890 = vmatpush1.bf16.xpose.msra.mxu0 0
        %891 = vmatprep.subr.bf16.mxu0 0
        %892 = vmatpush1.bf16.xpose.msra.mxu0 %v676
        %893 = vmatprep.subr.bf16.mxu0 0
        %894 = vmatpush1.bf16.xpose.msra.mxu0 %v675
        %895 = vmatprep.subr.bf16.mxu0 0
        %896 = vmatpush1.bf16.xpose.msra.mxu0 %v674
        %897 = vmatprep.subr.bf16.mxu0 0
        %898 = vmatpush1.bf16.xpose.msra.mxu0 %v673
        %899 = vmatprep.subr.bf16.mxu0 0
        %900 = vmatpush2.bf16.xpose.msra.mxu0 0
        %901 = vmatprep.subr.bf16.mxu0 0
        %902 = vmatpush2.bf16.xpose.msra.mxu0 0
        %903 = vmatprep.subr.bf16.mxu0 0
        %904 = vmatpush2.bf16.xpose.msra.mxu0 0
        %905 = vmatprep.subr.bf16.mxu0 0
        %906 = vmatpush2.bf16.xpose.msra.mxu0 0
        %907 = vmatprep.subr.bf16.mxu0 0
        %908 = vmatpush2.bf16.xpose.msra.mxu0 0
        %909 = vmatprep.subr.bf16.mxu0 0
        %910 = vmatpush2.bf16.xpose.msra.mxu0 0
        %911 = vmatprep.subr.bf16.mxu0 0
        %912 = vmatpush2.bf16.xpose.msra.mxu0 0
        %913 = vmatprep.subr.bf16.mxu0 0
        %914 = vmatpush2.bf16.xpose.msra.mxu0 0
        %915 = vmatprep.mubr.bf16.mxu0 0
        %916 = vmatmul.mubr.bf16.gmra.mxu0 %v832
        %v917 = vpop.f32.mrf.mxu0
        %v918 = vadd.f32 0.0, %v917
        %v919 = vpop.f32.mrf.mxu0
        %v920 = vpop.f32.mrf.mxu0
        %v921 = vadd.f32 0.0, %v920
        %v922 = vpop.f32.mrf.mxu0
        %923 = vmatprep.mubr.bf16.mxu0 0
        %924 = vmatmul.mubr.bf16.gmra.mxu0 %v833
        %v925 = vpop.f32.mrf.mxu0
        %v926 = vadd.f32 0.0, %v925
        %v927 = vpop.f32.mrf.mxu0
        %v928 = vpop.f32.mrf.mxu0
        %v929 = vadd.f32 0.0, %v928
        %v930 = vpop.f32.mrf.mxu0
        %931 = vdwg.mxu0
        %v932 = vsel %vm531, %v869, -inf
        %933 = vmax.xlane.f32.xlu0 %v932
        %v934 = vpop.xlane.xlu0 %933
        %v935 = vsel %vm531, %v872, -inf
        %936 = vmax.xlane.f32.xlu0 %v935
        %v937 = vpop.xlane.xlu0 %936
        %v938 = vsel %vm531, %v877, -inf
        %939 = vmax.xlane.f32.xlu0 %v938
        %v940 = vpop.xlane.xlu0 %939
        %v941 = vsel %vm531, %v880, -inf
        %942 = vmax.xlane.f32.xlu0 %v941
        %v943 = vpop.xlane.xlu0 %942
        %v944 = vsel %vm531, %v918, -inf
        %945 = vmax.xlane.f32.xlu0 %v944
        %v946 = vpop.xlane.xlu0 %945
        %v947 = vsel %vm531, %v921, -inf
        %948 = vmax.xlane.f32.xlu0 %v947
        %v949 = vpop.xlane.xlu0 %948
        %v950 = vsel %vm531, %v926, -inf
        %951 = vmax.xlane.f32.xlu0 %v950
        %v952 = vpop.xlane.xlu0 %951
        %v953 = vsel %vm531, %v929, -inf
        %954 = vmax.xlane.f32.xlu0 %v953
        %v955 = vpop.xlane.xlu0 %954
        %v956 = vsub.f32 %v869, %v934
        %v957 = vsub.f32 %v872, %v937
        %v958 = vsub.f32 %v877, %v940
        %v959 = vsub.f32 %v880, %v943
        %v960 = vsub.f32 %v918, %v946
        %v961 = vsub.f32 %v921, %v949
        %v962 = vsub.f32 %v926, %v952
        %v963 = vsub.f32 %v929, %v955
        %v964 = vmul.f32 %v956, 1.442695
        %v965 = vpow.pop %v964
        %v966 = vmul.f32 %v957, 1.442695
        %v967 = vpow.pop %v966
        %v968 = vmul.f32 %v958, 1.442695
        %v969 = vpow.pop %v968
        %v970 = vmul.f32 %v959, 1.442695
        %v971 = vpow.pop %v970
        %v972 = vmul.f32 %v960, 1.442695
        %v973 = vpow.pop %v972
        %v974 = vmul.f32 %v961, 1.442695
        %v975 = vpow.pop %v974
        %v976 = vmul.f32 %v962, 1.442695
        %v977 = vpow.pop %v976
        %v978 = vmul.f32 %v963, 1.442695
        %v979 = vpow.pop %v978
        %v980 = vsel %vm531, %v965, 0.0
        %981 = vadd.xlane.f32.xlu0 %v980
        %v982 = vpop.xlane.xlu0 %981
        %v983 = vsel %vm531, %v967, 0.0
        %984 = vadd.xlane.f32.xlu0 %v983
        %v985 = vpop.xlane.xlu0 %984
        %v986 = vsel %vm531, %v969, 0.0
        %987 = vadd.xlane.f32.xlu0 %v986
        %v988 = vpop.xlane.xlu0 %987
        %v989 = vsel %vm531, %v971, 0.0
        %990 = vadd.xlane.f32.xlu0 %v989
        %v991 = vpop.xlane.xlu0 %990
        %v992 = vsel %vm531, %v973, 0.0
        %993 = vadd.xlane.f32.xlu0 %v992
        %v994 = vpop.xlane.xlu0 %993
        %v995 = vsel %vm531, %v975, 0.0
        %996 = vadd.xlane.f32.xlu0 %v995
        %v997 = vpop.xlane.xlu0 %996
        %v998 = vsel %vm531, %v977, 0.0
        %999 = vadd.xlane.f32.xlu0 %v998
        %v1000 = vpop.xlane.xlu0 %999
        %v1001 = vsel %vm531, %v979, 0.0
        %1002 = vadd.xlane.f32.xlu0 %v1001
        %v1003 = vpop.xlane.xlu0 %1002
        %v1004 = vrcp.pop %v982
        %v1005 = vrcp.pop %v985
        %v1006 = vrcp.pop %v988
        %v1007 = vrcp.pop %v991
        %v1008 = vrcp.pop %v994
        %v1009 = vrcp.pop %v997
        %v1010 = vrcp.pop %v1000
        %v1011 = vrcp.pop %v1003
        %v1012 = vmul.f32 %v965, %v1004
        %v1013 = vmul.f32 %v967, %v1005
        %v1014 = vmul.f32 %v969, %v1006
        %v1015 = vmul.f32 %v971, %v1007
        %v1016 = vmul.f32 %v973, %v1008
        %v1017 = vmul.f32 %v975, %v1009
        %v1018 = vmul.f32 %v977, %v1010
        %v1019 = vmul.f32 %v979, %v1011
        %v1020 = vpack.c.bf16 %v1013, %v1012
        %v1021 = vpack.c.bf16 %v1015, %v1014
        %v1022 = vpack.c.bf16 %v1017, %v1016
        %v1023 = vpack.c.bf16 %v1019, %v1018
        %v1025 = vsel %vm531, %v1020, 0
        %v1028 = vsel %vm531, %v1021, 0
        %1030 = vmatprep.subr.bf16.mxu0 0
        %1031 = vmatpush1.bf16.msra.mxu0 0
        %1032 = vmatprep.subr.bf16.mxu0 0
        %1033 = vmatpush1.bf16.msra.mxu0 0
        %1034 = vmatprep.subr.bf16.mxu0 0
        %1035 = vmatpush1.bf16.msra.mxu0 0
        %1036 = vmatprep.subr.bf16.mxu0 0
        %1037 = vmatpush1.bf16.msra.mxu0 0
        %1038 = vmatprep.subr.bf16.mxu0 0
        %1039 = vmatpush1.bf16.msra.mxu0 %v672
        %1040 = vmatprep.subr.bf16.mxu0 0
        %1041 = vmatpush1.bf16.msra.mxu0 %v671
        %1042 = vmatprep.subr.bf16.mxu0 0
        %1043 = vmatpush1.bf16.msra.mxu0 %v670
        %1044 = vmatprep.subr.bf16.mxu0 0
        %1045 = vmatpush1.bf16.msra.mxu0 %v669
        %1046 = vmatprep.subr.bf16.mxu0 0
        %1047 = vmatpush2.bf16.msra.mxu0 0
        %1048 = vmatprep.subr.bf16.mxu0 0
        %1049 = vmatpush2.bf16.msra.mxu0 0
        %1050 = vmatprep.subr.bf16.mxu0 0
        %1051 = vmatpush2.bf16.msra.mxu0 0
        %1052 = vmatprep.subr.bf16.mxu0 0
        %1053 = vmatpush2.bf16.msra.mxu0 0
        %1054 = vmatprep.subr.bf16.mxu0 0
        %1055 = vmatpush2.bf16.msra.mxu0 0
        %1056 = vmatprep.subr.bf16.mxu0 0
        %1057 = vmatpush2.bf16.msra.mxu0 0
        %1058 = vmatprep.subr.bf16.mxu0 0
        %1059 = vmatpush2.bf16.msra.mxu0 0
        %1060 = vmatprep.subr.bf16.mxu0 0
        %1061 = vmatpush2.bf16.msra.mxu0 0
        %1062 = vmatprep.mubr.bf16.mxu0 0
        %1063 = vmatmul.mubr.bf16.gmra.mxu0 %v1025
        %v1064 = vpop.f32.mrf.mxu0
        %v1065 = vadd.f32 0.0, %v1064
        %v1066 = vpop.f32.mrf.mxu0
        %v1067 = vpop.f32.mrf.mxu0
        %v1068 = vadd.f32 0.0, %v1067
        %v1069 = vpop.f32.mrf.mxu0
        %1070 = vmatprep.mubr.bf16.mxu0 0
        %1071 = vmatmul.mubr.bf16.gmra.mxu0 %v1028
        %v1072 = vpop.f32.mrf.mxu0
        %v1073 = vadd.f32 0.0, %v1072
        %v1074 = vpop.f32.mrf.mxu0
        %v1075 = vpop.f32.mrf.mxu0
        %v1076 = vadd.f32 0.0, %v1075
        %v1077 = vpop.f32.mrf.mxu0
        %1078 = vdwg.mxu0
        %v1080 = vsel %vm531, %v1022, 0
        %v1083 = vsel %vm531, %v1023, 0
        %1085 = vmatprep.subr.bf16.mxu0 0
        %1086 = vmatpush1.bf16.msra.mxu0 0
        %1087 = vmatprep.subr.bf16.mxu0 0
        %1088 = vmatpush1.bf16.msra.mxu0 0
        %1089 = vmatprep.subr.bf16.mxu0 0
        %1090 = vmatpush1.bf16.msra.mxu0 0
        %1091 = vmatprep.subr.bf16.mxu0 0
        %1092 = vmatpush1.bf16.msra.mxu0 0
        %1093 = vmatprep.subr.bf16.mxu0 0
        %1094 = vmatpush1.bf16.msra.mxu0 %v676
        %1095 = vmatprep.subr.bf16.mxu0 0
        %1096 = vmatpush1.bf16.msra.mxu0 %v675
        %1097 = vmatprep.subr.bf16.mxu0 0
        %1098 = vmatpush1.bf16.msra.mxu0 %v674
        %1099 = vmatprep.subr.bf16.mxu0 0
        %1100 = vmatpush1.bf16.msra.mxu0 %v673
        %1101 = vmatprep.subr.bf16.mxu0 0
        %1102 = vmatpush2.bf16.msra.mxu0 0
        %1103 = vmatprep.subr.bf16.mxu0 0
        %1104 = vmatpush2.bf16.msra.mxu0 0
        %1105 = vmatprep.subr.bf16.mxu0 0
        %1106 = vmatpush2.bf16.msra.mxu0 0
        %1107 = vmatprep.subr.bf16.mxu0 0
        %1108 = vmatpush2.bf16.msra.mxu0 0
        %1109 = vmatprep.subr.bf16.mxu0 0
        %1110 = vmatpush2.bf16.msra.mxu0 0
        %1111 = vmatprep.subr.bf16.mxu0 0
        %1112 = vmatpush2.bf16.msra.mxu0 0
        %1113 = vmatprep.subr.bf16.mxu0 0
        %1114 = vmatpush2.bf16.msra.mxu0 0
        %1115 = vmatprep.subr.bf16.mxu0 0
        %1116 = vmatpush2.bf16.msra.mxu0 0
        %1117 = vmatprep.mubr.bf16.mxu0 0
        %1118 = vmatmul.mubr.bf16.gmra.mxu0 %v1080
        %v1119 = vpop.f32.mrf.mxu0
        %v1120 = vadd.f32 0.0, %v1119
        %v1121 = vpop.f32.mrf.mxu0
        %v1122 = vpop.f32.mrf.mxu0
        %v1123 = vadd.f32 0.0, %v1122
        %v1124 = vpop.f32.mrf.mxu0
        %1125 = vmatprep.mubr.bf16.mxu0 0
        %1126 = vmatmul.mubr.bf16.gmra.mxu0 %v1083
        %v1127 = vpop.f32.mrf.mxu0
        %v1128 = vadd.f32 0.0, %v1127
        %v1129 = vpop.f32.mrf.mxu0
        %v1130 = vpop.f32.mrf.mxu0
        %v1131 = vadd.f32 0.0, %v1130
        %v1132 = vpop.f32.mrf.mxu0
        %1133 = vdwg.mxu0
        %v1134 = vpack.c.bf16 %v1068, %v1065
        %v1135 = vpack.c.bf16 %v1076, %v1073
        %v1136 = vpack.c.bf16 %v1123, %v1120
        %v1137 = vpack.c.bf16 %v1131, %v1128
        %v1138 = vld [vmem:[#allocation10] sm:$0xf]
        %v1139 = vld [vmem:[#allocation10 + $0x4] sm:$0xf]
        %v1140 = vld [vmem:[#allocation10 + $0x8] sm:$0xf]
        %v1141 = vld [vmem:[#allocation10 + $0xc] sm:$0xf]
        %v1142 = vld [vmem:[#allocation10 + $0x10] sm:$0xf]
        %v1143 = vld [vmem:[#allocation10 + $0x14] sm:$0xf]
        %v1144 = vld [vmem:[#allocation10 + $0x18] sm:$0xf]
        %v1145 = vld [vmem:[#allocation10 + $0x1c] sm:$0xf]
        %v1146 = vld [vmem:[#allocation10 + $0x20] sm:$0xf]
        %v1147 = vld [vmem:[#allocation10 + $0x24] sm:$0xf]
        %v1148 = vld [vmem:[#allocation10 + $0x28] sm:$0xf]
        %v1149 = vld [vmem:[#allocation10 + $0x2c] sm:$0xf]
        %v1150 = vld [vmem:[#allocation10 + $0x30] sm:$0xf]
        %v1151 = vld [vmem:[#allocation10 + $0x34] sm:$0xf]
        %v1152 = vld [vmem:[#allocation10 + $0x38] sm:$0xf]
        %v1153 = vld [vmem:[#allocation10 + $0x3c] sm:$0xf]
        %v1154 = vld [vmem:[#allocation11] sm:$0xf]
        %v1155 = vld [vmem:[#allocation11 + $0x4] sm:$0xf]
        %v1156 = vld [vmem:[#allocation11 + $0x8] sm:$0xf]
        %v1157 = vld [vmem:[#allocation11 + $0xc] sm:$0xf]
        %v1158 = vld [vmem:[#allocation11 + $0x10] sm:$0xf]
        %v1159 = vld [vmem:[#allocation11 + $0x14] sm:$0xf]
        %v1160 = vld [vmem:[#allocation11 + $0x18] sm:$0xf]
        %v1161 = vld [vmem:[#allocation11 + $0x1c] sm:$0xf]
        %v1162 = vld [vmem:[#allocation11 + $0x20] sm:$0xf]
        %v1163 = vld [vmem:[#allocation11 + $0x24] sm:$0xf]
        %v1164 = vld [vmem:[#allocation11 + $0x28] sm:$0xf]
        %v1165 = vld [vmem:[#allocation11 + $0x2c] sm:$0xf]
        %v1166 = vld [vmem:[#allocation11 + $0x30] sm:$0xf]
        %v1167 = vld [vmem:[#allocation11 + $0x34] sm:$0xf]
        %v1168 = vld [vmem:[#allocation11 + $0x38] sm:$0xf]
        %v1169 = vld [vmem:[#allocation11 + $0x3c] sm:$0xf]
        %v1186 = vunpack.c.l.b16 %v1154
        %v1187 = vunpack.c.l.b16 %v1155
        %v1188 = vunpack.c.l.b16 %v1156
        %v1189 = vunpack.c.l.b16 %v1157
        %v1190 = vunpack.c.l.b16 %v1158
        %v1191 = vunpack.c.l.b16 %v1159
        %v1192 = vunpack.c.l.b16 %v1160
        %v1193 = vunpack.c.l.b16 %v1161
        %v1194 = vunpack.c.l.b16 %v1162
        %v1195 = vunpack.c.l.b16 %v1163
        %v1196 = vunpack.c.l.b16 %v1164
        %v1197 = vunpack.c.l.b16 %v1165
        %v1198 = vunpack.c.l.b16 %v1166
        %v1199 = vunpack.c.l.b16 %v1167
        %v1200 = vunpack.c.l.b16 %v1168
        %v1201 = vunpack.c.l.b16 %v1169
        %v1202 = vpack.c.b16 %v1187, %v1186
        %v1203 = vpack.c.b16 %v1189, %v1188
        %v1204 = vpack.c.b16 %v1191, %v1190
        %v1205 = vpack.c.b16 %v1193, %v1192
        %v1206 = vpack.c.b16 %v1195, %v1194
        %v1207 = vpack.c.b16 %v1197, %v1196
        %v1208 = vpack.c.b16 %v1199, %v1198
        %v1209 = vpack.c.b16 %v1201, %v1200
        %1218 = vmatprep.subr.bf16.mxu0 0
        %1219 = vmatpush1.bf16.msra.mxu0 %v1209
        %1220 = vmatprep.subr.bf16.mxu0 0
        %1221 = vmatpush1.bf16.msra.mxu0 %v1208
        %1222 = vmatprep.subr.bf16.mxu0 0
        %1223 = vmatpush1.bf16.msra.mxu0 %v1207
        %1224 = vmatprep.subr.bf16.mxu0 0
        %1225 = vmatpush1.bf16.msra.mxu0 %v1206
        %1226 = vmatprep.subr.bf16.mxu0 0
        %1227 = vmatpush1.bf16.msra.mxu0 %v1205
        %1228 = vmatprep.subr.bf16.mxu0 0
        %1229 = vmatpush1.bf16.msra.mxu0 %v1204
        %1230 = vmatprep.subr.bf16.mxu0 0
        %1231 = vmatpush1.bf16.msra.mxu0 %v1203
        %1232 = vmatprep.subr.bf16.mxu0 0
        %1233 = vmatpush1.bf16.msra.mxu0 %v1202
        %1234 = vmatprep.subr.bf16.mxu0 0
        %1235 = vmatpush2.bf16.msra.mxu0 0
        %1236 = vmatprep.subr.bf16.mxu0 0
        %1237 = vmatpush2.bf16.msra.mxu0 0
        %1238 = vmatprep.subr.bf16.mxu0 0
        %1239 = vmatpush2.bf16.msra.mxu0 0
        %1240 = vmatprep.subr.bf16.mxu0 0
        %1241 = vmatpush2.bf16.msra.mxu0 0
        %1242 = vmatprep.subr.bf16.mxu0 0
        %1243 = vmatpush2.bf16.msra.mxu0 0
        %1244 = vmatprep.subr.bf16.mxu0 0
        %1245 = vmatpush2.bf16.msra.mxu0 0
        %1246 = vmatprep.subr.bf16.mxu0 0
        %1247 = vmatpush2.bf16.msra.mxu0 0
        %1248 = vmatprep.subr.bf16.mxu0 0
        %1249 = vmatpush2.bf16.msra.mxu0 0
        %1250 = vmatprep.mubr.bf16.mxu0 0
        %1251 = vmatmul.mubr.bf16.gmra.mxu0 %v1134
        %v1252 = vpop.f32.mrf.mxu0
        %v1253 = vadd.f32 0.0, %v1252
        %v1254 = vpop.f32.mrf.mxu0
        %v1255 = vpop.f32.mrf.mxu0
        %v1256 = vadd.f32 0.0, %v1255
        %v1257 = vpop.f32.mrf.mxu0
        %1258 = vmatprep.mubr.bf16.mxu0 0
        %1259 = vmatmul.mubr.bf16.gmra.mxu0 %v1135
        %v1260 = vpop.f32.mrf.mxu0
        %v1261 = vadd.f32 0.0, %v1260
        %v1262 = vpop.f32.mrf.mxu0
        %v1263 = vpop.f32.mrf.mxu0
        %v1264 = vadd.f32 0.0, %v1263
        %v1265 = vpop.f32.mrf.mxu0
        %1266 = vmatprep.mubr.bf16.mxu0 0
        %1267 = vmatmul.mubr.bf16.gmra.mxu0 %v1136
        %v1268 = vpop.f32.mrf.mxu0
        %v1269 = vadd.f32 0.0, %v1268
        %v1270 = vpop.f32.mrf.mxu0
        %v1271 = vpop.f32.mrf.mxu0
        %v1272 = vadd.f32 0.0, %v1271
        %v1273 = vpop.f32.mrf.mxu0
        %1274 = vmatprep.mubr.bf16.mxu0 0
        %1275 = vmatmul.mubr.bf16.gmra.mxu0 %v1137
        %v1276 = vpop.f32.mrf.mxu0
        %v1277 = vadd.f32 0.0, %v1276
        %v1278 = vpop.f32.mrf.mxu0
        %v1279 = vpop.f32.mrf.mxu0
        %v1280 = vadd.f32 0.0, %v1279
        %v1281 = vpop.f32.mrf.mxu0
        %1282 = vdwg.mxu0
        %v1299 = vunpack.c.l.b16 %v1138
        %v1300 = vunpack.c.l.b16 %v1139
        %v1301 = vunpack.c.l.b16 %v1140
        %v1302 = vunpack.c.l.b16 %v1141
        %v1303 = vunpack.c.l.b16 %v1142
        %v1304 = vunpack.c.l.b16 %v1143
        %v1305 = vunpack.c.l.b16 %v1144
        %v1306 = vunpack.c.l.b16 %v1145
        %v1307 = vunpack.c.l.b16 %v1146
        %v1308 = vunpack.c.l.b16 %v1147
        %v1309 = vunpack.c.l.b16 %v1148
        %v1310 = vunpack.c.l.b16 %v1149
        %v1311 = vunpack.c.l.b16 %v1150
        %v1312 = vunpack.c.l.b16 %v1151
        %v1313 = vunpack.c.l.b16 %v1152
        %v1314 = vunpack.c.l.b16 %v1153
        %v1315 = vpack.c.b16 %v1300, %v1299
        %v1316 = vpack.c.b16 %v1302, %v1301
        %v1317 = vpack.c.b16 %v1304, %v1303
        %v1318 = vpack.c.b16 %v1306, %v1305
        %v1319 = vpack.c.b16 %v1308, %v1307
        %v1320 = vpack.c.b16 %v1310, %v1309
        %v1321 = vpack.c.b16 %v1312, %v1311
        %v1322 = vpack.c.b16 %v1314, %v1313
        %1331 = vmatprep.subr.bf16.mxu0 0
        %1332 = vmatpush1.bf16.msra.mxu0 %v1322
        %1333 = vmatprep.subr.bf16.mxu0 0
        %1334 = vmatpush1.bf16.msra.mxu0 %v1321
        %1335 = vmatprep.subr.bf16.mxu0 0
        %1336 = vmatpush1.bf16.msra.mxu0 %v1320
        %1337 = vmatprep.subr.bf16.mxu0 0
        %1338 = vmatpush1.bf16.msra.mxu0 %v1319
        %1339 = vmatprep.subr.bf16.mxu0 0
        %1340 = vmatpush1.bf16.msra.mxu0 %v1318
        %1341 = vmatprep.subr.bf16.mxu0 0
        %1342 = vmatpush1.bf16.msra.mxu0 %v1317
        %1343 = vmatprep.subr.bf16.mxu0 0
        %1344 = vmatpush1.bf16.msra.mxu0 %v1316
        %1345 = vmatprep.subr.bf16.mxu0 0
        %1346 = vmatpush1.bf16.msra.mxu0 %v1315
        %1347 = vmatprep.subr.bf16.mxu0 0
        %1348 = vmatpush2.bf16.msra.mxu0 0
        %1349 = vmatprep.subr.bf16.mxu0 0
        %1350 = vmatpush2.bf16.msra.mxu0 0
        %1351 = vmatprep.subr.bf16.mxu0 0
        %1352 = vmatpush2.bf16.msra.mxu0 0
        %1353 = vmatprep.subr.bf16.mxu0 0
        %1354 = vmatpush2.bf16.msra.mxu0 0
        %1355 = vmatprep.subr.bf16.mxu0 0
        %1356 = vmatpush2.bf16.msra.mxu0 0
        %1357 = vmatprep.subr.bf16.mxu0 0
        %1358 = vmatpush2.bf16.msra.mxu0 0
        %1359 = vmatprep.subr.bf16.mxu0 0
        %1360 = vmatpush2.bf16.msra.mxu0 0
        %1361 = vmatprep.subr.bf16.mxu0 0
        %1362 = vmatpush2.bf16.msra.mxu0 0
        %1363 = vmatprep.mubr.bf16.mxu0 0
        %1364 = vmatmul.mubr.bf16.gmra.mxu0 %v830
        %v1365 = vpop.f32.mrf.mxu0
        %v1366 = vadd.f32 %v1253, %v1365
        %v1367 = vpop.f32.mrf.mxu0
        %v1368 = vpop.f32.mrf.mxu0
        %v1369 = vadd.f32 %v1256, %v1368
        %v1370 = vpop.f32.mrf.mxu0
        %1371 = vmatprep.mubr.bf16.mxu0 0
        %1372 = vmatmul.mubr.bf16.gmra.mxu0 %v831
        %v1373 = vpop.f32.mrf.mxu0
        %v1374 = vadd.f32 %v1261, %v1373
        %v1375 = vpop.f32.mrf.mxu0
        %v1376 = vpop.f32.mrf.mxu0
        %v1377 = vadd.f32 %v1264, %v1376
        %v1378 = vpop.f32.mrf.mxu0
        %1379 = vmatprep.mubr.bf16.mxu0 0
        %1380 = vmatmul.mubr.bf16.gmra.mxu0 %v832
        %v1381 = vpop.f32.mrf.mxu0
        %v1382 = vadd.f32 %v1269, %v1381
        %v1383 = vpop.f32.mrf.mxu0
        %v1384 = vpop.f32.mrf.mxu0
        %v1385 = vadd.f32 %v1272, %v1384
        %v1386 = vpop.f32.mrf.mxu0
        %1387 = vmatprep.mubr.bf16.mxu0 0
        %1388 = vmatmul.mubr.bf16.gmra.mxu0 %v833
        %v1389 = vpop.f32.mrf.mxu0
        %v1390 = vadd.f32 %v1277, %v1389
        %v1391 = vpop.f32.mrf.mxu0
        %v1392 = vpop.f32.mrf.mxu0
        %v1393 = vadd.f32 %v1280, %v1392
        %v1394 = vpop.f32.mrf.mxu0
        %1395 = vdwg.mxu0
        %v1396 = vld [vmem:[%s7] sm:$0x1]
        %v1398 = vlaneseq
        %v1399 = vshrl.u32 %v1398, 7
        %v1400 = vsub.s32 0, %v1399
        %v1401 = vrot.slane %v1396, %v1400
        %v1403 = vadd.f32 %v1366, %v1401
        %v1404 = vadd.f32 %v1369, %v1401
        %v1405 = vadd.f32 %v1374, %v1401
        %v1406 = vadd.f32 %v1377, %v1401
        %v1407 = vadd.f32 %v1382, %v1401
        %v1408 = vadd.f32 %v1385, %v1401
        %v1409 = vadd.f32 %v1390, %v1401
        %v1410 = vadd.f32 %v1393, %v1401
        %1411 = vst [vmem:[%s423] sm:$0xff] %v1403
        %1412 = vst [vmem:[%s423 + $0x8] sm:$0xff] %v1404
        %1413 = vst [vmem:[%s423 + $0x10] sm:$0xff] %v1405
        %1414 = vst [vmem:[%s423 + $0x18] sm:$0xff] %v1406
        %1415 = vst [vmem:[%s423 + $0x20] sm:$0xff] %v1407
        %1416 = vst [vmem:[%s423 + $0x28] sm:$0xff] %v1408
        %1417 = vst [vmem:[%s423 + $0x30] sm:$0xff] %v1409
        %1418 = vst [vmem:[%s423 + $0x38] sm:$0xff] %v1410
        %s1419 = sand.u32 %s216, 1
        %s1420 = scalar_lea.sflag [#allocation4], %s1419
        %s1421 = sand.u32 %s216, 1
        %s1422 = smul.addr %s1421, 64
        %s1423 = scalar_lea.vmem [#allocation13], %s1422
        // Predicated region
        $region77: #{tpu_custom_call.1} parent=51 // pred_check
          %p1424 = pneg %p226
        $region78: #{tpu_custom_call.1} parent=51 // pred_check_branch
          %1426 = sbr.rel (%p1424) target = $region80
        $region79: #{tpu_custom_call.1} parent=51 // pred_region
          %s1427 = smul.u32 2, %s30
          %s1429 = ssub.s32 1024, 1024
          %1430 = vsyncadd %s1420, %s1429
          %s1431 = smul.addr %s1427, 4
          %s1432 = smul.addr %s1431, 128
          %s1433 = scalar_lea.hbm %s8, %s1432
          %s1434 = sshll.u32 %s1423, 4
          %s1435 = int_to_ptr.vmem [resolvable:$true] %s1434
          %1440 = dma.vmem_to_hbm [thread:$0]  %s1435, 1024, %s1433, %s1420, 128, 128, 8
        $region80: #{tpu_custom_call.1} parent=51 // pred_fallthru
          _
      $region52: #{tpu_custom_call.1} parent=5 // pred_fallthru
        _
      %p1441 = scmp.le.s32.totalorder 2, %s25
      // Predicated region
      $region81: #{tpu_custom_call.1} parent=5 // pred_check
        %p1442 = pneg %p1441
      $region82: #{tpu_custom_call.1} parent=5 // pred_check_branch
        %1444 = sbr.rel (%p1442) target = $region84
      $region83: #{tpu_custom_call.1} parent=5 // pred_region
        %s1445 = ssub.s32 %s25, 2
        // Predicated region
        $region85: #{tpu_custom_call.1} parent=83 // pred_check
          %p1446 = pneg %p232
        $region86: #{tpu_custom_call.1} parent=83 // pred_check_branch
          %1448 = sbr.rel (%p1446) target = $region88
        $region87: #{tpu_custom_call.1} parent=83 // pred_region
          %s1449 = sand.u32 %s217, 1
          %s1450 = scalar_lea.sflag [#allocation4], %s1449
          %s1451 = sand.u32 %s217, 1
          %s1452 = smul.addr %s1451, 64
          %s1453 = scalar_lea.vmem [#allocation13], %s1452
          %1454 = dma.done %s1450, 1024
        $region88: #{tpu_custom_call.1} parent=83 // pred_fallthru
          _
      $region84: #{tpu_custom_call.1} parent=5 // pred_fallthru
        _
    $region6: #{tpu_custom_call.1} parent=1 // loop_footer
      %s29 = sadd.s32 1, %s25
    $region7: #{tpu_custom_call.1} parent=1 // loop_footer_branch
      %24 = sbr.rel target = $region3
    $region8: #{tpu_custom_call.1} parent=1 // loop_exit
      _
    %1455 = vsyncpa [#allocation3], 1
    %s1456 = scalar_lea.sflag [#allocation3], 1
    %1457 = vsyncpa %s1456, 1
    %1458 = vsyncpa [#allocation6], 1
    %s1459 = scalar_lea.sflag [#allocation6], 1
    %1460 = vsyncpa %s1459, 1
    %1461 = vsyncpa [#allocation9], 1
    %1462 = vsyncpa [#allocation12], 1
    %1463 = vsyncpa [#allocation4], 1
    %s1464 = scalar_lea.sflag [#allocation4], 1
    %1465 = vsyncpa %s1464, 1

</llo_original>
